<compile_context>
chip_gen: v7x
topology: tpu7x:2x2x1
jax: 0.10.0
libtpu: 0.0.40
codegen_flags: <defaults>
</compile_context>

<pallas_src>
import math

import jax
import jax.numpy as jnp
import numpy as np
from jax import lax
from jax.experimental import pallas as pl
from jax.experimental.pallas import tpu as pltpu

_NEG = -1e30   # max-pool padding value (finite; every 3x3 window has a real tap)


# ----------------------------------------------------------------------------
# Fused Inception kernel (built per static H, padded width, channel split, Nb)
# ----------------------------------------------------------------------------
def _make_inception_kernel(H, WPP, ch1x1, co23, Nb):
    LC = H * WPP                    # per-image output "core" length (lane dim)
    LX = (H + 2) * WPP + 2          # padded+tail flattened input length
    LR = LC + 2 * WPP               # row-max length needed for the ky shifts
    s_ctr = WPP + 1                 # flat offset of a window's center tap
    offsets = [ky * WPP + kx for ky in range(3) for kx in range(3)]

    def kernel(mask_ref, x_ref, wa_ref, ba_ref, wb_ref, bb_ref, wp_ref, bp_ref,
               o_ref):
        # mask_ref: (1, LX)   1.0 at real pixels, 0.0 at spatial padding
        # x_ref:    (Nb, Cin, LX)  zero-padded, spatially flattened input
        # wa_ref:   (ch1x1+c23red, Cin),  ba_ref: (ch1x1+c23red, 1)
        # wb_ref:   (co23, 9*c23red) stacked 3x3 taps,  bb_ref: (co23, 1)
        # wp_ref:   (pool_proj, Cin),  bp_ref: (pool_proj, 1)
        # o_ref:    (Nb, Ctot, LC)
        mask = mask_ref[...]                              # (1, LX)
        wa = wa_ref[...]; ba = ba_ref[...]
        wb = wb_ref[...]; bb = bb_ref[...]
        wp = wp_ref[...]; bp = bp_ref[...]

        for b in range(Nb):                               # static unroll
            x = x_ref[b]                                  # (Cin, LX)

            # ---- fused 1x1 convs: branch1 + branch2-reduce + branch3-reduce
            ya = jnp.dot(wa, x, preferred_element_type=jnp.float32)
            ya = jnp.maximum(ya + ba, 0.0)                # (Ca, LX)
            br1 = ya[:ch1x1, s_ctr:s_ctr + LC]            # (ch1x1, LC)
            r23 = ya[ch1x1:, :] * mask                    # zero at padding
                                                          # (= conv zero-pad)

            # ---- branch2 + branch3: 3x3 conv as ONE stacked deep-K matmul
            rstack = jnp.concatenate([r23[:, s:s + LC] for s in offsets],
                                     axis=0)              # (9*c23red, LC)
            br23 = jnp.dot(wb, rstack, preferred_element_type=jnp.float32)
            br23 = jnp.maximum(br23 + bb, 0.0)            # (co23, LC)

            # ---- branch4: separable 3x3/s1/p1 max-pool, then 1x1 conv
            xm = jnp.where(mask > 0.0, x, _NEG)           # masked once
            rmax = jnp.maximum(jnp.maximum(xm[:, 0:LR], xm[:, 1:LR + 1]),
                               xm[:, 2:LR + 2])           # max over kx
            mp = jnp.maximum(jnp.maximum(rmax[:, 0:LC],
                                         rmax[:, WPP:WPP + LC]),
                             rmax[:, 2 * WPP:2 * WPP + LC])   # max over ky
            br4 = jnp.dot(wp, mp, preferred_element_type=jnp.float32)
            br4 = jnp.maximum(br4 + bp, 0.0)              # (pool_proj, LC)

            # ---- concatenated, lane-dense, channel-major output
            o_ref[b, :ch1x1, :] = br1
            o_ref[b, ch1x1:ch1x1 + co23, :] = br23
            o_ref[b, ch1x1 + co23:, :] = br4

    return kernel


def _pick_padded_width(H, W):
    """Smallest WPP >= W+2 with H*WPP % 128 == 0, unless that costs > 2x."""
    g = 128 // math.gcd(H, 128)
    wpp = -((W + 2) // -g) * g              # ceil(W+2, multiple of g)
    if wpp > 2 * (W + 2):
        wpp = W + 2                         # alignment too expensive; skip it
    return wpp


# ----------------------------------------------------------------------------
# Wrapper: layout glue (pad/flatten) + single pallas_call
# ----------------------------------------------------------------------------
def inception_forward(x_nchw, KP):
    """Fused Inception forward.  x: (N, Cin, H, W) NCHW -> (N, Ctot, H, W)."""
    N, Cin, H, W = x_nchw.shape
    WPP = _pick_padded_width(H, W)
    LC = H * WPP
    L = (H + 2) * WPP
    LX = L + 2                 # tail margin so the last tap slice stays in range

    wa, ba = KP['wa'], KP['ba']
    wb, bb = KP['wb'], KP['bb']
    wp, bp = KP['wp'], KP['bp']
    ch1x1 = KP['ch1x1']
    ca = wa.shape[0]
    co23 = wb.shape[0]
    cpool = wp.shape[0]
    ctot = ch1x1 + co23 + cpool

    # Batch blocking: biggest Nb dividing N that keeps grid length >= 2
    # (so dimension_semantics=("parallel",) can still feed both v7x TCs).
    Nb = 1
    for cand in range(N, 0, -1):
        if N % cand == 0 and N // cand >= 2:
            Nb = cand
            break
    grid = (N // Nb,)

    x = x_nchw.astype(jnp.float32)
    xpad = jnp.pad(x, ((0, 0), (0, 0), (1, 1), (1, WPP - W - 1)))  # zero pad
    x_flat = jnp.pad(xpad.reshape(N, Cin, L), ((0, 0), (0, 0), (0, LX - L)))
    mask2d = jnp.pad(jnp.ones((H, W), jnp.float32), ((1, 1), (1, WPP - W - 1)))
    mask = jnp.pad(mask2d.reshape(1, L), ((0, 0), (0, LX - L)))

    kernel = _make_inception_kernel(H, WPP, ch1x1, co23, Nb)

    # Cost estimate: useful MACs only (zero half of the block-diag wb excluded).
    flops = int(N * (2 * ca * Cin * LX
                     + 2 * KP['k3_macs'] * LC
                     + 2 * cpool * Cin * LC))
    w_bytes = 4 * (wa.size + ba.size + wb.size + bb.size + wp.size + bp.size)
    bytes_accessed = int(4 * (N * Cin * LX + LX + N * ctot * LC) + w_bytes)

    # Explicit VMEM budget (double-buffered I/O blocks + weights + temporaries),
    # clamped so it stays valid on v7x (64 MiB physical VMEM).
    io_bytes = 4 * Nb * (Cin * LX + ctot * LC)
    scratch_bytes = 4 * (ca * LX + 9 * (ca - ch1x1) * LC + 3 * Cin * LX)
    est = 2 * (2 * io_bytes + w_bytes + scratch_bytes)
    vmem_limit = int(min(64 * 1024 * 1024, max(32 * 1024 * 1024, est)))

    out_core = pl.pallas_call(
        kernel,
        out_shape=jax.ShapeDtypeStruct((N, ctot, LC), jnp.float32),
        grid=grid,
        in_specs=[
            pl.BlockSpec((1, LX), lambda n: (0, 0)),
            pl.BlockSpec((Nb, Cin, LX), lambda n: (n, 0, 0)),
            pl.BlockSpec(wa.shape, lambda n: (0, 0)),
            pl.BlockSpec(ba.shape, lambda n: (0, 0)),
            pl.BlockSpec(wb.shape, lambda n: (0, 0)),
            pl.BlockSpec(bb.shape, lambda n: (0, 0)),
            pl.BlockSpec(wp.shape, lambda n: (0, 0)),
            pl.BlockSpec(bp.shape, lambda n: (0, 0)),
        ],
        out_specs=pl.BlockSpec((Nb, ctot, LC), lambda n: (n, 0, 0)),
        compiler_params=pltpu.CompilerParams(
            dimension_semantics=("parallel",),
            vmem_limit_bytes=vmem_limit),
        cost_estimate=pl.CostEstimate(flops=flops, transcendentals=0,
                                      bytes_accessed=bytes_accessed),
    )(mask, x_flat, wa, ba, wb, bb, wp, bp)

    # Core index c = h*WPP + w  ->  reshape + crop yields NCHW directly.
    return out_core.reshape(N, ctot, H, WPP)[:, :, :, :W]


# ----------------------------------------------------------------------------
# Parameter construction (BasicConv2d = conv(no bias) + BN(eval), scale folded)
# ----------------------------------------------------------------------------
def make_basic_conv_params(key, cin, cout, ksize, eps=1e-3):
    kw, kg, kb, km, kv = jax.random.split(key, 5)
    fan_in = cin * ksize * ksize
    w = jax.random.normal(kw, (cout, cin, ksize, ksize), jnp.float32) * \
        (2.0 / fan_in) ** 0.5
    gamma = 1.0 + 0.1 * jax.random.normal(kg, (cout,), jnp.float32)
    beta = 0.1 * jax.random.normal(kb, (cout,), jnp.float32)
    rmean = 0.1 * jax.random.normal(km, (cout,), jnp.float32)
    rvar = 1.0 + 0.5 * jax.random.uniform(kv, (cout,), jnp.float32)
    scale = gamma / jnp.sqrt(rvar + eps)
    bias = beta - rmean * scale
    w_folded = w * scale.reshape(-1, 1, 1, 1)     # fold BN scale into weights
    if ksize == 1:
        w_folded = w_folded.reshape(cout, cin)
    return w_folded, bias


def pack_inception_params(P):
    """Pack folded per-layer weights into the fused-kernel operand layout."""
    wa = jnp.concatenate([P['w1'], P['w2a'], P['w3a']], axis=0)      # (Ca, Cin)
    ba = jnp.concatenate([P['b1'], P['b2a'], P['b3a']]).reshape(-1, 1)
    ch3x3, c2r = P['w2b'].shape[0], P['w2b'].shape[1]
    ch5x5, c3r = P['w3b'].shape[0], P['w3b'].shape[1]
    co23, c23r = ch3x3 + ch5x5, c2r + c3r
    w2b = jnp.transpose(P['w2b'], (2, 3, 0, 1)).reshape(9, ch3x3, c2r)
    w3b = jnp.transpose(P['w3b'], (2, 3, 0, 1)).reshape(9, ch5x5, c3r)
    wb9 = jnp.zeros((9, co23, c23r), jnp.float32)
    wb9 = wb9.at[:, :ch3x3, :c2r].set(w2b)     # block-diagonal: branch2 block
    wb9 = wb9.at[:, ch3x3:, c2r:].set(w3b)     #                 branch3 block
    # Stacked-K layout: rows = output channels, cols = (tap, reduce-channel).
    wb = jnp.transpose(wb9, (1, 0, 2)).reshape(co23, 9 * c23r)
    bb = jnp.concatenate([P['b2b'], P['b3b']]).reshape(-1, 1)
    return {'wa': wa, 'ba': ba, 'wb': wb, 'bb': bb,
            'wp': P['w4'], 'bp': P['b4'].reshape(-1, 1),
            'ch1x1': int(P['w1'].shape[0]),
            'k3_macs': int(9 * (ch3x3 * c2r + ch5x5 * c3r))}


# ----------------------------------------------------------------------------
# Pure-JAX NCHW reference (same folded weights) for verification
# ----------------------------------------------------------------------------
def reference_forward(x, P):
    def cbr(inp, w, b, padding):
        if w.ndim == 2:
            w = w.reshape(w.shape[0], w.shape[1], 1, 1)
        y = lax.conv_general_dilated(inp, w, (1, 1), padding,
                                     dimension_numbers=('NCHW', 'OIHW', 'NCHW'))
        return jnp.maximum(y + b.reshape(1, -1, 1, 1), 0.0)

    b1 = cbr(x, P['w1'], P['b1'], 'VALID')
    b2 = cbr(cbr(x, P['w2a'], P['b2a'], 'VALID'),
             P['w2b'], P['b2b'], ((1, 1), (1, 1)))
    b3 = cbr(cbr(x, P['w3a'], P['b3a'], 'VALID'),
             P['w3b'], P['b3b'], ((1, 1), (1, 1)))
    mp = lax.reduce_window(x, -jnp.inf, lax.max, (1, 1, 3, 3), (1, 1, 1, 1),
                           ((0, 0), (0, 0), (1, 1), (1, 1)))
    b4 = cbr(mp, P['w4'], P['b4'], 'VALID')
    return jnp.concatenate([b1, b2, b3, b4], axis=1)


if __name__ == "__main__":
    # Small Inception config: Inception(4, 8, 4, 8, 4, 8, 8) on a 4x4x16x16
    # input (N=4 exercises batch blocking Nb=2 with a length-2 parallel grid).
    N, Cin, H, W = 4, 4, 16, 16
    ch1x1, ch3x3red, ch3x3, ch5x5red, ch5x5, pool_proj = 8, 4, 8, 4, 8, 8

    key = jax.random.PRNGKey(0)
    kx_, kp_ = jax.random.split(key)
    x = jax.random.normal(kx_, (N, Cin, H, W), jnp.float32)

    keys = jax.random.split(kp_, 6)
    P = {}
    P['w1'], P['b1'] = make_basic_conv_params(keys[0], Cin, ch1x1, 1)
    P['w2a'], P['b2a'] = make_basic_conv_params(keys[1], Cin, ch3x3red, 1)
    P['w2b'], P['b2b'] = make_basic_conv_params(keys[2], ch3x3red, ch3x3, 3)
    P['w3a'], P['b3a'] = make_basic_conv_params(keys[3], Cin, ch5x5red, 1)
    P['w3b'], P['b3b'] = make_basic_conv_params(keys[4], ch5x5red, ch5x5, 3)
    P['w4'], P['b4'] = make_basic_conv_params(keys[5], Cin, pool_proj, 1)

    KP = pack_inception_params(P)

    out = jax.block_until_ready(inception_forward(x, KP))
    assert out.shape == (N, ch1x1 + ch3x3 + ch5x5 + pool_proj, H, W)

    ref = jax.block_until_ready(reference_forward(x.astype(jnp.float32), P))
    np.testing.assert_allclose(np.asarray(out), np.asarray(ref),
                               rtol=1e-4, atol=1e-4)
    print("KERNEL_OK")
</pallas_src>

<mosaic_0001>
module attributes {stable_mosaic.version = 11 : i64} {
  func.func @kernel(%arg0: i32, %arg1: memref<1x434xf32, #tpu.memory_space<vmem>>, %arg2: memref<2x4x434xf32, #tpu.memory_space<vmem>>, %arg3: memref<16x4xf32, #tpu.memory_space<vmem>>, %arg4: memref<16x1xf32, #tpu.memory_space<vmem>>, %arg5: memref<16x72xf32, #tpu.memory_space<vmem>>, %arg6: memref<16x1xf32, #tpu.memory_space<vmem>>, %arg7: memref<8x4xf32, #tpu.memory_space<vmem>>, %arg8: memref<8x1xf32, #tpu.memory_space<vmem>>, %arg9: memref<2x32x384xf32, #tpu.memory_space<vmem>>) attributes {dimension_semantics = [#tpu.dimension_semantics<parallel>], iteration_bounds = array<i64: 2>, scalar_prefetch = 0 : i64, scratch_operands = 0 : i64, tpu.core_type = #tpu.core_type<tc>, window_params = [{pipeline_mode = #tpu.pipeline_mode<synchronous>, transform_indices = @transform_0, window_bounds = array<i64: 1, 434>}, {transform_indices = @transform_1, window_bounds = array<i64: 2, 4, 434>}, {pipeline_mode = #tpu.pipeline_mode<synchronous>, transform_indices = @transform_2, window_bounds = array<i64: 16, 4>}, {pipeline_mode = #tpu.pipeline_mode<synchronous>, transform_indices = @transform_3, window_bounds = array<i64: 16, 1>}, {pipeline_mode = #tpu.pipeline_mode<synchronous>, transform_indices = @transform_4, window_bounds = array<i64: 16, 72>}, {pipeline_mode = #tpu.pipeline_mode<synchronous>, transform_indices = @transform_5, window_bounds = array<i64: 16, 1>}, {pipeline_mode = #tpu.pipeline_mode<synchronous>, transform_indices = @transform_6, window_bounds = array<i64: 8, 4>}, {pipeline_mode = #tpu.pipeline_mode<synchronous>, transform_indices = @transform_7, window_bounds = array<i64: 8, 1>}, {transform_indices = @transform_8, window_bounds = array<i64: 2, 32, 384>}]} {
    %c0 = arith.constant 0 : index
    %c0_0 = arith.constant 0 : index
    %0 = vector.load %arg1[%c0, %c0_0] : memref<1x434xf32, #tpu.memory_space<vmem>>, vector<1x434xf32>
    %c0_1 = arith.constant 0 : index
    %c0_2 = arith.constant 0 : index
    %1 = vector.load %arg3[%c0_1, %c0_2] : memref<16x4xf32, #tpu.memory_space<vmem>>, vector<16x4xf32>
    %c0_3 = arith.constant 0 : index
    %c0_4 = arith.constant 0 : index
    %2 = vector.load %arg4[%c0_3, %c0_4] : memref<16x1xf32, #tpu.memory_space<vmem>>, vector<16x1xf32>
    %c0_5 = arith.constant 0 : index
    %c0_6 = arith.constant 0 : index
    %3 = vector.load %arg5[%c0_5, %c0_6] : memref<16x72xf32, #tpu.memory_space<vmem>>, vector<16x72xf32>
    %c0_7 = arith.constant 0 : index
    %c0_8 = arith.constant 0 : index
    %4 = vector.load %arg6[%c0_7, %c0_8] : memref<16x1xf32, #tpu.memory_space<vmem>>, vector<16x1xf32>
    %c0_9 = arith.constant 0 : index
    %c0_10 = arith.constant 0 : index
    %5 = vector.load %arg7[%c0_9, %c0_10] : memref<8x4xf32, #tpu.memory_space<vmem>>, vector<8x4xf32>
    %c0_11 = arith.constant 0 : index
    %c0_12 = arith.constant 0 : index
    %6 = vector.load %arg8[%c0_11, %c0_12] : memref<8x1xf32, #tpu.memory_space<vmem>>, vector<8x1xf32>
    %c0_13 = arith.constant 0 : index
    %c0_14 = arith.constant 0 : index
    %c0_15 = arith.constant 0 : index
    %7 = vector.load %arg2[%c0_13, %c0_14, %c0_15] : memref<2x4x434xf32, #tpu.memory_space<vmem>>, vector<1x4x434xf32>
    %8 = vector.shape_cast %7 : vector<1x4x434xf32> to vector<4x434xf32>
    %cst = arith.constant dense<0.000000e+00> : vector<16x434xf32>
    %9 = tpu.matmul %1, %8, %cst {dimension_numbers = #tpu.dot_dimension_numbers<[1], [0], [0], [1], [0, 0, 1, 1], [], []>} : vector<16x4xf32>, vector<4x434xf32>, vector<16x434xf32> -> vector<16x434xf32>
    %10 = vector.broadcast %2 : vector<16x1xf32> to vector<16x434xf32>
    %11 = arith.addf %9, %10 : vector<16x434xf32>
    %cst_16 = arith.constant 0.000000e+00 : f32
    %12 = vector.broadcast %cst_16 : f32 to vector<16x434xf32>
    %13 = arith.maximumf %11, %12 : vector<16x434xf32>
    %14 = vector.extract_strided_slice %13 {offsets = [0, 25], sizes = [8, 384], strides = [1, 1]} : vector<16x434xf32> to vector<8x384xf32>
    %15 = vector.extract_strided_slice %13 {offsets = [8, 0], sizes = [8, 434], strides = [1, 1]} : vector<16x434xf32> to vector<8x434xf32>
    %16 = vector.broadcast %0 : vector<1x434xf32> to vector<8x434xf32>
    %17 = arith.mulf %15, %16 : vector<8x434xf32>
    %18 = vector.extract_strided_slice %17 {offsets = [0, 0], sizes = [8, 384], strides = [1, 1]} : vector<8x434xf32> to vector<8x384xf32>
    %19 = vector.extract_strided_slice %17 {offsets = [0, 1], sizes = [8, 384], strides = [1, 1]} : vector<8x434xf32> to vector<8x384xf32>
    %20 = vector.extract_strided_slice %17 {offsets = [0, 2], sizes = [8, 384], strides = [1, 1]} : vector<8x434xf32> to vector<8x384xf32>
    %21 = vector.extract_strided_slice %17 {offsets = [0, 24], sizes = [8, 384], strides = [1, 1]} : vector<8x434xf32> to vector<8x384xf32>
    %22 = vector.extract_strided_slice %17 {offsets = [0, 25], sizes = [8, 384], strides = [1, 1]} : vector<8x434xf32> to vector<8x384xf32>
    %23 = vector.extract_strided_slice %17 {offsets = [0, 26], sizes = [8, 384], strides = [1, 1]} : vector<8x434xf32> to vector<8x384xf32>
    %24 = vector.extract_strided_slice %17 {offsets = [0, 48], sizes = [8, 384], strides = [1, 1]} : vector<8x434xf32> to vector<8x384xf32>
    %25 = vector.extract_strided_slice %17 {offsets = [0, 49], sizes = [8, 384], strides = [1, 1]} : vector<8x434xf32> to vector<8x384xf32>
    %26 = vector.extract_strided_slice %17 {offsets = [0, 50], sizes = [8, 384], strides = [1, 1]} : vector<8x434xf32> to vector<8x384xf32>
    %27 = tpu.concatenate %18, %19, %20, %21, %22, %23, %24, %25, %26 in 0 : vector<8x384xf32>, vector<8x384xf32>, vector<8x384xf32>, vector<8x384xf32>, vector<8x384xf32>, vector<8x384xf32>, vector<8x384xf32>, vector<8x384xf32>, vector<8x384xf32> -> vector<72x384xf32>
    %cst_17 = arith.constant dense<0.000000e+00> : vector<16x384xf32>
    %28 = tpu.matmul %3, %27, %cst_17 {dimension_numbers = #tpu.dot_dimension_numbers<[1], [0], [0], [1], [0, 0, 1, 1], [], []>} : vector<16x72xf32>, vector<72x384xf32>, vector<16x384xf32> -> vector<16x384xf32>
    %29 = vector.broadcast %4 : vector<16x1xf32> to vector<16x384xf32>
    %30 = arith.addf %28, %29 : vector<16x384xf32>
    %cst_18 = arith.constant 0.000000e+00 : f32
    %31 = vector.broadcast %cst_18 : f32 to vector<16x384xf32>
    %32 = arith.maximumf %30, %31 : vector<16x384xf32>
    %cst_19 = arith.constant 0.000000e+00 : f32
    %33 = vector.broadcast %cst_19 : f32 to vector<1x434xf32>
    %34 = arith.cmpf ogt, %0, %33 : vector<1x434xf32>
    %cst_20 = arith.constant -1.000000e+30 : f32
    %35 = vector.shape_cast %34 : vector<1x434xi1> to vector<1x434xi1>
    %36 = vector.broadcast %35 : vector<1x434xi1> to vector<4x434xi1>
    %37 = vector.broadcast %cst_20 : f32 to vector<4x434xf32>
    %38 = arith.select %36, %8, %37 : vector<4x434xi1>, vector<4x434xf32>
    %39 = vector.extract_strided_slice %38 {offsets = [0, 0], sizes = [4, 432], strides = [1, 1]} : vector<4x434xf32> to vector<4x432xf32>
    %40 = vector.extract_strided_slice %38 {offsets = [0, 1], sizes = [4, 432], strides = [1, 1]} : vector<4x434xf32> to vector<4x432xf32>
    %41 = arith.maximumf %39, %40 : vector<4x432xf32>
    %42 = vector.extract_strided_slice %38 {offsets = [0, 2], sizes = [4, 432], strides = [1, 1]} : vector<4x434xf32> to vector<4x432xf32>
    %43 = arith.maximumf %41, %42 : vector<4x432xf32>
    %44 = vector.extract_strided_slice %43 {offsets = [0, 0], sizes = [4, 384], strides = [1, 1]} : vector<4x432xf32> to vector<4x384xf32>
    %45 = vector.extract_strided_slice %43 {offsets = [0, 24], sizes = [4, 384], strides = [1, 1]} : vector<4x432xf32> to vector<4x384xf32>
    %46 = arith.maximumf %44, %45 : vector<4x384xf32>
    %47 = vector.extract_strided_slice %43 {offsets = [0, 48], sizes = [4, 384], strides = [1, 1]} : vector<4x432xf32> to vector<4x384xf32>
    %48 = arith.maximumf %46, %47 : vector<4x384xf32>
    %cst_21 = arith.constant dense<0.000000e+00> : vector<8x384xf32>
    %49 = tpu.matmul %5, %48, %cst_21 {dimension_numbers = #tpu.dot_dimension_numbers<[1], [0], [0], [1], [0, 0, 1, 1], [], []>} : vector<8x4xf32>, vector<4x384xf32>, vector<8x384xf32> -> vector<8x384xf32>
    %50 = vector.broadcast %6 : vector<8x1xf32> to vector<8x384xf32>
    %51 = arith.addf %49, %50 : vector<8x384xf32>
    %cst_22 = arith.constant 0.000000e+00 : f32
    %52 = vector.broadcast %cst_22 : f32 to vector<8x384xf32>
    %53 = arith.maximumf %51, %52 : vector<8x384xf32>
    %c0_23 = arith.constant 0 : index
    %c0_24 = arith.constant 0 : index
    %c0_25 = arith.constant 0 : index
    %54 = vector.load %arg9[%c0_23, %c0_24, %c0_25] : memref<2x32x384xf32, #tpu.memory_space<vmem>>, vector<1x8x384xf32>
    %55 = vector.shape_cast %54 : vector<1x8x384xf32> to vector<8x384xf32>
    %56 = vector.shape_cast %14 : vector<8x384xf32> to vector<1x8x384xf32>
    tpu.vector_store %arg9[%c0_23, %c0_24, %c0_25], %56 {strides = array<i32>} : memref<2x32x384xf32, #tpu.memory_space<vmem>>, vector<1x8x384xf32>,
    %c0_26 = arith.constant 0 : index
    %c8 = arith.constant 8 : index
    %c0_27 = arith.constant 0 : index
    %57 = vector.load %arg9[%c0_26, %c8, %c0_27] : memref<2x32x384xf32, #tpu.memory_space<vmem>>, vector<1x16x384xf32>
    %58 = vector.shape_cast %57 : vector<1x16x384xf32> to vector<16x384xf32>
    %59 = vector.shape_cast %32 : vector<16x384xf32> to vector<1x16x384xf32>
    tpu.vector_store %arg9[%c0_26, %c8, %c0_27], %59 {strides = array<i32>} : memref<2x32x384xf32, #tpu.memory_space<vmem>>, vector<1x16x384xf32>,
    %c0_28 = arith.constant 0 : index
    %c24 = arith.constant 24 : index
    %c0_29 = arith.constant 0 : index
    %60 = vector.load %arg9[%c0_28, %c24, %c0_29] : memref<2x32x384xf32, #tpu.memory_space<vmem>>, vector<1x8x384xf32>
    %61 = vector.shape_cast %60 : vector<1x8x384xf32> to vector<8x384xf32>
    %62 = vector.shape_cast %53 : vector<8x384xf32> to vector<1x8x384xf32>
    tpu.vector_store %arg9[%c0_28, %c24, %c0_29], %62 {strides = array<i32>} : memref<2x32x384xf32, #tpu.memory_space<vmem>>, vector<1x8x384xf32>,
    %c1 = arith.constant 1 : index
    %c0_30 = arith.constant 0 : index
    %c0_31 = arith.constant 0 : index
    %63 = vector.load %arg2[%c1, %c0_30, %c0_31] : memref<2x4x434xf32, #tpu.memory_space<vmem>>, vector<1x4x434xf32>
    %64 = vector.shape_cast %63 : vector<1x4x434xf32> to vector<4x434xf32>
    %cst_32 = arith.constant dense<0.000000e+00> : vector<16x434xf32>
    %65 = tpu.matmul %1, %64, %cst_32 {dimension_numbers = #tpu.dot_dimension_numbers<[1], [0], [0], [1], [0, 0, 1, 1], [], []>} : vector<16x4xf32>, vector<4x434xf32>, vector<16x434xf32> -> vector<16x434xf32>
    %66 = vector.broadcast %2 : vector<16x1xf32> to vector<16x434xf32>
    %67 = arith.addf %65, %66 : vector<16x434xf32>
    %cst_33 = arith.constant 0.000000e+00 : f32
    %68 = vector.broadcast %cst_33 : f32 to vector<16x434xf32>
    %69 = arith.maximumf %67, %68 : vector<16x434xf32>
    %70 = vector.extract_strided_slice %69 {offsets = [0, 25], sizes = [8, 384], strides = [1, 1]} : vector<16x434xf32> to vector<8x384xf32>
    %71 = vector.extract_strided_slice %69 {offsets = [8, 0], sizes = [8, 434], strides = [1, 1]} : vector<16x434xf32> to vector<8x434xf32>
    %72 = vector.broadcast %0 : vector<1x434xf32> to vector<8x434xf32>
    %73 = arith.mulf %71, %72 : vector<8x434xf32>
    %74 = vector.extract_strided_slice %73 {offsets = [0, 0], sizes = [8, 384], strides = [1, 1]} : vector<8x434xf32> to vector<8x384xf32>
    %75 = vector.extract_strided_slice %73 {offsets = [0, 1], sizes = [8, 384], strides = [1, 1]} : vector<8x434xf32> to vector<8x384xf32>
    %76 = vector.extract_strided_slice %73 {offsets = [0, 2], sizes = [8, 384], strides = [1, 1]} : vector<8x434xf32> to vector<8x384xf32>
    %77 = vector.extract_strided_slice %73 {offsets = [0, 24], sizes = [8, 384], strides = [1, 1]} : vector<8x434xf32> to vector<8x384xf32>
    %78 = vector.extract_strided_slice %73 {offsets = [0, 25], sizes = [8, 384], strides = [1, 1]} : vector<8x434xf32> to vector<8x384xf32>
    %79 = vector.extract_strided_slice %73 {offsets = [0, 26], sizes = [8, 384], strides = [1, 1]} : vector<8x434xf32> to vector<8x384xf32>
    %80 = vector.extract_strided_slice %73 {offsets = [0, 48], sizes = [8, 384], strides = [1, 1]} : vector<8x434xf32> to vector<8x384xf32>
    %81 = vector.extract_strided_slice %73 {offsets = [0, 49], sizes = [8, 384], strides = [1, 1]} : vector<8x434xf32> to vector<8x384xf32>
    %82 = vector.extract_strided_slice %73 {offsets = [0, 50], sizes = [8, 384], strides = [1, 1]} : vector<8x434xf32> to vector<8x384xf32>
    %83 = tpu.concatenate %74, %75, %76, %77, %78, %79, %80, %81, %82 in 0 : vector<8x384xf32>, vector<8x384xf32>, vector<8x384xf32>, vector<8x384xf32>, vector<8x384xf32>, vector<8x384xf32>, vector<8x384xf32>, vector<8x384xf32>, vector<8x384xf32> -> vector<72x384xf32>
    %cst_34 = arith.constant dense<0.000000e+00> : vector<16x384xf32>
    %84 = tpu.matmul %3, %83, %cst_34 {dimension_numbers = #tpu.dot_dimension_numbers<[1], [0], [0], [1], [0, 0, 1, 1], [], []>} : vector<16x72xf32>, vector<72x384xf32>, vector<16x384xf32> -> vector<16x384xf32>
    %85 = vector.broadcast %4 : vector<16x1xf32> to vector<16x384xf32>
    %86 = arith.addf %84, %85 : vector<16x384xf32>
    %cst_35 = arith.constant 0.000000e+00 : f32
    %87 = vector.broadcast %cst_35 : f32 to vector<16x384xf32>
    %88 = arith.maximumf %86, %87 : vector<16x384xf32>
    %cst_36 = arith.constant 0.000000e+00 : f32
    %89 = vector.broadcast %cst_36 : f32 to vector<1x434xf32>
    %90 = arith.cmpf ogt, %0, %89 : vector<1x434xf32>
    %cst_37 = arith.constant -1.000000e+30 : f32
    %91 = vector.shape_cast %90 : vector<1x434xi1> to vector<1x434xi1>
    %92 = vector.broadcast %91 : vector<1x434xi1> to vector<4x434xi1>
    %93 = vector.broadcast %cst_37 : f32 to vector<4x434xf32>
    %94 = arith.select %92, %64, %93 : vector<4x434xi1>, vector<4x434xf32>
    %95 = vector.extract_strided_slice %94 {offsets = [0, 0], sizes = [4, 432], strides = [1, 1]} : vector<4x434xf32> to vector<4x432xf32>
    %96 = vector.extract_strided_slice %94 {offsets = [0, 1], sizes = [4, 432], strides = [1, 1]} : vector<4x434xf32> to vector<4x432xf32>
    %97 = arith.maximumf %95, %96 : vector<4x432xf32>
    %98 = vector.extract_strided_slice %94 {offsets = [0, 2], sizes = [4, 432], strides = [1, 1]} : vector<4x434xf32> to vector<4x432xf32>
    %99 = arith.maximumf %97, %98 : vector<4x432xf32>
    %100 = vector.extract_strided_slice %99 {offsets = [0, 0], sizes = [4, 384], strides = [1, 1]} : vector<4x432xf32> to vector<4x384xf32>
    %101 = vector.extract_strided_slice %99 {offsets = [0, 24], sizes = [4, 384], strides = [1, 1]} : vector<4x432xf32> to vector<4x384xf32>
    %102 = arith.maximumf %100, %101 : vector<4x384xf32>
    %103 = vector.extract_strided_slice %99 {offsets = [0, 48], sizes = [4, 384], strides = [1, 1]} : vector<4x432xf32> to vector<4x384xf32>
    %104 = arith.maximumf %102, %103 : vector<4x384xf32>
    %cst_38 = arith.constant dense<0.000000e+00> : vector<8x384xf32>
    %105 = tpu.matmul %5, %104, %cst_38 {dimension_numbers = #tpu.dot_dimension_numbers<[1], [0], [0], [1], [0, 0, 1, 1], [], []>} : vector<8x4xf32>, vector<4x384xf32>, vector<8x384xf32> -> vector<8x384xf32>
    %106 = vector.broadcast %6 : vector<8x1xf32> to vector<8x384xf32>
    %107 = arith.addf %105, %106 : vector<8x384xf32>
    %cst_39 = arith.constant 0.000000e+00 : f32
    %108 = vector.broadcast %cst_39 : f32 to vector<8x384xf32>
    %109 = arith.maximumf %107, %108 : vector<8x384xf32>
    %c1_40 = arith.constant 1 : index
    %c0_41 = arith.constant 0 : index
    %c0_42 = arith.constant 0 : index
    %110 = vector.load %arg9[%c1_40, %c0_41, %c0_42] : memref<2x32x384xf32, #tpu.memory_space<vmem>>, vector<1x8x384xf32>
    %111 = vector.shape_cast %110 : vector<1x8x384xf32> to vector<8x384xf32>
    %112 = vector.shape_cast %70 : vector<8x384xf32> to vector<1x8x384xf32>
    tpu.vector_store %arg9[%c1_40, %c0_41, %c0_42], %112 {strides = array<i32>} : memref<2x32x384xf32, #tpu.memory_space<vmem>>, vector<1x8x384xf32>,
    %c1_43 = arith.constant 1 : index
    %c8_44 = arith.constant 8 : index
    %c0_45 = arith.constant 0 : index
    %113 = vector.load %arg9[%c1_43, %c8_44, %c0_45] : memref<2x32x384xf32, #tpu.memory_space<vmem>>, vector<1x16x384xf32>
    %114 = vector.shape_cast %113 : vector<1x16x384xf32> to vector<16x384xf32>
    %115 = vector.shape_cast %88 : vector<16x384xf32> to vector<1x16x384xf32>
    tpu.vector_store %arg9[%c1_43, %c8_44, %c0_45], %115 {strides = array<i32>} : memref<2x32x384xf32, #tpu.memory_space<vmem>>, vector<1x16x384xf32>,
    %c1_46 = arith.constant 1 : index
    %c24_47 = arith.constant 24 : index
    %c0_48 = arith.constant 0 : index
    %116 = vector.load %arg9[%c1_46, %c24_47, %c0_48] : memref<2x32x384xf32, #tpu.memory_space<vmem>>, vector<1x8x384xf32>
    %117 = vector.shape_cast %116 : vector<1x8x384xf32> to vector<8x384xf32>
    %118 = vector.shape_cast %109 : vector<8x384xf32> to vector<1x8x384xf32>
    tpu.vector_store %arg9[%c1_46, %c24_47, %c0_48], %118 {strides = array<i32>} : memref<2x32x384xf32, #tpu.memory_space<vmem>>, vector<1x8x384xf32>,
    return
  }
  func.func @transform_0(%arg0: i32) -> (i32, i32) {
    %c0_i32 = arith.constant 0 : i32
    %c0_i32_0 = arith.constant 0 : i32
    %c0_i32_1 = arith.constant 0 : i32
    return %c0_i32, %c0_i32_0 : i32, i32
  }
  func.func @transform_1(%arg0: i32) -> (i32, i32, i32) {
    %c0_i32 = arith.constant 0 : i32
    %c0_i32_0 = arith.constant 0 : i32
    %c0_i32_1 = arith.constant 0 : i32
    return %arg0, %c0_i32, %c0_i32_0 : i32, i32, i32
  }
  func.func @transform_2(%arg0: i32) -> (i32, i32) {
    %c0_i32 = arith.constant 0 : i32
    %c0_i32_0 = arith.constant 0 : i32
    %c0_i32_1 = arith.constant 0 : i32
    return %c0_i32, %c0_i32_0 : i32, i32
  }
  func.func @transform_3(%arg0: i32) -> (i32, i32) {
    %c0_i32 = arith.constant 0 : i32
    %c0_i32_0 = arith.constant 0 : i32
    %c0_i32_1 = arith.constant 0 : i32
    return %c0_i32, %c0_i32_0 : i32, i32
  }
  func.func @transform_4(%arg0: i32) -> (i32, i32) {
    %c0_i32 = arith.constant 0 : i32
    %c0_i32_0 = arith.constant 0 : i32
    %c0_i32_1 = arith.constant 0 : i32
    return %c0_i32, %c0_i32_0 : i32, i32
  }
  func.func @transform_5(%arg0: i32) -> (i32, i32) {
    %c0_i32 = arith.constant 0 : i32
    %c0_i32_0 = arith.constant 0 : i32
    %c0_i32_1 = arith.constant 0 : i32
    return %c0_i32, %c0_i32_0 : i32, i32
  }
  func.func @transform_6(%arg0: i32) -> (i32, i32) {
    %c0_i32 = arith.constant 0 : i32
    %c0_i32_0 = arith.constant 0 : i32
    %c0_i32_1 = arith.constant 0 : i32
    return %c0_i32, %c0_i32_0 : i32, i32
  }
  func.func @transform_7(%arg0: i32) -> (i32, i32) {
    %c0_i32 = arith.constant 0 : i32
    %c0_i32_0 = arith.constant 0 : i32
    %c0_i32_1 = arith.constant 0 : i32
    return %c0_i32, %c0_i32_0 : i32, i32
  }
  func.func @transform_8(%arg0: i32) -> (i32, i32, i32) {
    %c0_i32 = arith.constant 0 : i32
    %c0_i32_0 = arith.constant 0 : i32
    %c0_i32_1 = arith.constant 0 : i32
    return %arg0, %c0_i32, %c0_i32_0 : i32, i32, i32
  }
}

</mosaic_0001>

<llo_original>
// kernel: tpu_custom_call.1
$region0: #{tpu_custom_call.1}
  #allocation0 [shape = 'u32[]', space=smem, size = 0x4, offset = 0x4, fixed_abs, tag = 'smem constant byte address 0x4 - core index']
  #allocation1 [shape = 'u32[144,128]{1,0:T(1,128)}', space=vmem, size = 0x12000, scoped, tag = 'internal scratch']
  %s0 = inlined_call_operand.hbm [shape: f32[1,434], index: 0, kind: input, shape index: {}]
  %s1 = inlined_call_operand.vmem [shape: f32[4,4,434], index: 1, kind: input, shape index: {}]
  %s2 = inlined_call_operand.vmem [shape: f32[16,4], index: 2, kind: input, shape index: {}]
  %s3 = inlined_call_operand.vmem [shape: f32[16,1], index: 3, kind: input, shape index: {}]
  %s4 = inlined_call_operand.vmem [shape: f32[16,72], index: 4, kind: input, shape index: {}]
  %s5 = inlined_call_operand.vmem [shape: f32[16,1], index: 5, kind: input, shape index: {}]
  %s6 = inlined_call_operand.vmem [shape: f32[8,4], index: 6, kind: input, shape index: {}]
  %s7 = inlined_call_operand.vmem [shape: f32[8,1], index: 7, kind: input, shape index: {}]
  %s8 = inlined_call_operand.hbm [shape: f32[4,32,384], index: 8, kind: output, shape index: {}]
  %s9 = sld [smem:[#allocation0]]
  $region69: #{tpu_custom_call.1} parent=0
    _
  %s11 = ssub.s32 1, %s9
  %s12 = scalar_select 0, %s11, %s9
  $region1: #{tpu_custom_call.1} parent=0
    #allocation2 [shape = 'u8[2048]{0}', space=vmem, size = 0x800, scoped, tag = 'input window, operand 0, single buffered']
    #allocation3 [shape = 's32[2]{0}', space=sflag, size = 0x8, scoped, tag = 'scoped memory for tpu_custom_call.1']
    #allocation4 [shape = 's32[2]{0}', space=sflag, size = 0x8, scoped, tag = 'scoped memory for tpu_custom_call.1']
    #allocation5 [shape = 'u8[196608]{0}', space=vmem, size = 0x30000, scoped, tag = 'output window, operand 0']
    %13 = vsyncpa [#allocation3], 0
    %14 = vsyncpa [#allocation4], 0
    %s15 = scalar_lea.sflag [#allocation4], 1
    %16 = vsyncpa %s15, 0
    loop: start=0, step=1, limit=4
    $region2: #{tpu_custom_call.1} parent=1 // loop_pre_header
      _
    $region3: #{tpu_custom_call.1} parent=1 // loop_header
      %s18 = sphi 0, %s22
      %p19 = scmp.ge.s32.totalorder %s18, 4
      %s26 = sphi 0, %s26
      %s28 = sphi 0, %s26
      %s29 = sphi 0, %s28
      %s43 = sphi 0, %s29
      %s49 = sphi 0, %s51
      %s52 = sphi 0, %s49
      %s53 = sphi 0, %s52
      %s69 = sphi 0, %s53
      %s73 = sphi 0, %s73
      %s75 = sphi 0, %s73
      %s76 = sphi 0, %s75
      %s90 = sphi 0, %s76
      %s94 = sphi 0, %s94
      %s96 = sphi 0, %s94
      %s97 = sphi 0, %s96
      %s111 = sphi 0, %s97
      %s115 = sphi 0, %s115
      %s117 = sphi 0, %s115
      %s118 = sphi 0, %s117
      %s132 = sphi 0, %s118
      %s136 = sphi 0, %s136
      %s138 = sphi 0, %s136
      %s139 = sphi 0, %s138
      %s153 = sphi 0, %s139
      %s157 = sphi 0, %s157
      %s159 = sphi 0, %s157
      %s160 = sphi 0, %s159
      %s174 = sphi 0, %s160
      %s178 = sphi 0, %s178
      %s180 = sphi 0, %s178
      %s181 = sphi 0, %s180
      %s195 = sphi 0, %s181
      %s201 = sphi 0, %s203
      %s204 = sphi 0, %s201
      %s205 = sphi 0, %s204
      %s221 = sphi 0, %s205
    $region4: #{tpu_custom_call.1} parent=1 // loop_header_branch
      %21 = sbr.rel (%p19) target = $region8
    $region5: #{tpu_custom_call.1} parent=1 // loop_body
      %s23 = ssub.s32 %s18, 1
      %s24 = ssub.s32 %s18, 2
      %s25 = sadd.s32 %s18, 1
      %s27 = sadd.s32 %s26, 1
      %p30 = scmp.eq.s32.totalorder %s18, 1
      %p31 = scmp.ne.s32.totalorder %s26, %s28
      %p32 = scmp.eq.s32.totalorder %s18, 0
      %p33 = por %p31, %p32
      %p34 = scmp.ne.s32.totalorder %s26, %s28
      %p35 = scmp.eq.s32.totalorder %s23, 1
      %p36 = por %p34, %p35
      %p37 = scmp.ne.s32.totalorder %s28, %s29
      %p38 = scmp.eq.s32.totalorder %s23, 0
      %p39 = por %p37, %p38
      %p40 = scmp.ne.s32.totalorder %s28, %s29
      %p41 = scmp.eq.s32.totalorder %s24, 1
      %p42 = por %p40, %p41
      %p44 = scmp.ne.s32.totalorder %s29, %s43
      %p45 = scmp.eq.s32.totalorder %s24, 0
      %p46 = por %p44, %p45
      %s47 = ssub.s32 %s18, %s25
      %p48 = scmp.eq.s32.totalorder %s47, 0
      %s50 = sadd.s32 %s49, 1
      %s51 = scalar_select %p48, %s49, %s50
      %p54 = pneg %p48
      %p55 = scmp.eq.s32.totalorder %s18, 1
      %p56 = por %p54, %p55
      %p57 = scmp.ne.s32.totalorder %s49, %s52
      %p58 = scmp.eq.s32.totalorder %s18, 0
      %p59 = por %p57, %p58
      %p60 = scmp.ne.s32.totalorder %s49, %s52
      %p61 = scmp.eq.s32.totalorder %s23, 1
      %p62 = por %p60, %p61
      %p63 = scmp.ne.s32.totalorder %s52, %s53
      %p64 = scmp.eq.s32.totalorder %s23, 0
      %p65 = por %p63, %p64
      %p66 = scmp.ne.s32.totalorder %s52, %s53
      %p67 = scmp.eq.s32.totalorder %s24, 1
      %p68 = por %p66, %p67
      %p70 = scmp.ne.s32.totalorder %s53, %s69
      %p71 = scmp.eq.s32.totalorder %s24, 0
      %p72 = por %p70, %p71
      %s74 = sadd.s32 %s73, 1
      %p77 = scmp.eq.s32.totalorder %s18, 1
      %p78 = scmp.ne.s32.totalorder %s73, %s75
      %p79 = scmp.eq.s32.totalorder %s18, 0
      %p80 = por %p78, %p79
      %p81 = scmp.ne.s32.totalorder %s73, %s75
      %p82 = scmp.eq.s32.totalorder %s23, 1
      %p83 = por %p81, %p82
      %p84 = scmp.ne.s32.totalorder %s75, %s76
      %p85 = scmp.eq.s32.totalorder %s23, 0
      %p86 = por %p84, %p85
      %p87 = scmp.ne.s32.totalorder %s75, %s76
      %p88 = scmp.eq.s32.totalorder %s24, 1
      %p89 = por %p87, %p88
      %p91 = scmp.ne.s32.totalorder %s76, %s90
      %p92 = scmp.eq.s32.totalorder %s24, 0
      %p93 = por %p91, %p92
      %s95 = sadd.s32 %s94, 1
      %p98 = scmp.eq.s32.totalorder %s18, 1
      %p99 = scmp.ne.s32.totalorder %s94, %s96
      %p100 = scmp.eq.s32.totalorder %s18, 0
      %p101 = por %p99, %p100
      %p102 = scmp.ne.s32.totalorder %s94, %s96
      %p103 = scmp.eq.s32.totalorder %s23, 1
      %p104 = por %p102, %p103
      %p105 = scmp.ne.s32.totalorder %s96, %s97
      %p106 = scmp.eq.s32.totalorder %s23, 0
      %p107 = por %p105, %p106
      %p108 = scmp.ne.s32.totalorder %s96, %s97
      %p109 = scmp.eq.s32.totalorder %s24, 1
      %p110 = por %p108, %p109
      %p112 = scmp.ne.s32.totalorder %s97, %s111
      %p113 = scmp.eq.s32.totalorder %s24, 0
      %p114 = por %p112, %p113
      %s116 = sadd.s32 %s115, 1
      %p119 = scmp.eq.s32.totalorder %s18, 1
      %p120 = scmp.ne.s32.totalorder %s115, %s117
      %p121 = scmp.eq.s32.totalorder %s18, 0
      %p122 = por %p120, %p121
      %p123 = scmp.ne.s32.totalorder %s115, %s117
      %p124 = scmp.eq.s32.totalorder %s23, 1
      %p125 = por %p123, %p124
      %p126 = scmp.ne.s32.totalorder %s117, %s118
      %p127 = scmp.eq.s32.totalorder %s23, 0
      %p128 = por %p126, %p127
      %p129 = scmp.ne.s32.totalorder %s117, %s118
      %p130 = scmp.eq.s32.totalorder %s24, 1
      %p131 = por %p129, %p130
      %p133 = scmp.ne.s32.totalorder %s118, %s132
      %p134 = scmp.eq.s32.totalorder %s24, 0
      %p135 = por %p133, %p134
      %s137 = sadd.s32 %s136, 1
      %p140 = scmp.eq.s32.totalorder %s18, 1
      %p141 = scmp.ne.s32.totalorder %s136, %s138
      %p142 = scmp.eq.s32.totalorder %s18, 0
      %p143 = por %p141, %p142
      %p144 = scmp.ne.s32.totalorder %s136, %s138
      %p145 = scmp.eq.s32.totalorder %s23, 1
      %p146 = por %p144, %p145
      %p147 = scmp.ne.s32.totalorder %s138, %s139
      %p148 = scmp.eq.s32.totalorder %s23, 0
      %p149 = por %p147, %p148
      %p150 = scmp.ne.s32.totalorder %s138, %s139
      %p151 = scmp.eq.s32.totalorder %s24, 1
      %p152 = por %p150, %p151
      %p154 = scmp.ne.s32.totalorder %s139, %s153
      %p155 = scmp.eq.s32.totalorder %s24, 0
      %p156 = por %p154, %p155
      %s158 = sadd.s32 %s157, 1
      %p161 = scmp.eq.s32.totalorder %s18, 1
      %p162 = scmp.ne.s32.totalorder %s157, %s159
      %p163 = scmp.eq.s32.totalorder %s18, 0
      %p164 = por %p162, %p163
      %p165 = scmp.ne.s32.totalorder %s157, %s159
      %p166 = scmp.eq.s32.totalorder %s23, 1
      %p167 = por %p165, %p166
      %p168 = scmp.ne.s32.totalorder %s159, %s160
      %p169 = scmp.eq.s32.totalorder %s23, 0
      %p170 = por %p168, %p169
      %p171 = scmp.ne.s32.totalorder %s159, %s160
      %p172 = scmp.eq.s32.totalorder %s24, 1
      %p173 = por %p171, %p172
      %p175 = scmp.ne.s32.totalorder %s160, %s174
      %p176 = scmp.eq.s32.totalorder %s24, 0
      %p177 = por %p175, %p176
      %s179 = sadd.s32 %s178, 1
      %p182 = scmp.eq.s32.totalorder %s18, 1
      %p183 = scmp.ne.s32.totalorder %s178, %s180
      %p184 = scmp.eq.s32.totalorder %s18, 0
      %p185 = por %p183, %p184
      %p186 = scmp.ne.s32.totalorder %s178, %s180
      %p187 = scmp.eq.s32.totalorder %s23, 1
      %p188 = por %p186, %p187
      %p189 = scmp.ne.s32.totalorder %s180, %s181
      %p190 = scmp.eq.s32.totalorder %s23, 0
      %p191 = por %p189, %p190
      %p192 = scmp.ne.s32.totalorder %s180, %s181
      %p193 = scmp.eq.s32.totalorder %s24, 1
      %p194 = por %p192, %p193
      %p196 = scmp.ne.s32.totalorder %s181, %s195
      %p197 = scmp.eq.s32.totalorder %s24, 0
      %p198 = por %p196, %p197
      %s199 = ssub.s32 %s18, %s25
      %p200 = scmp.eq.s32.totalorder %s199, 0
      %s202 = sadd.s32 %s201, 1
      %s203 = scalar_select %p200, %s201, %s202
      %p206 = pneg %p200
      %p207 = scmp.eq.s32.totalorder %s18, 1
      %p208 = por %p206, %p207
      %p209 = scmp.ne.s32.totalorder %s201, %s204
      %p210 = scmp.eq.s32.totalorder %s18, 0
      %p211 = por %p209, %p210
      %p212 = scmp.ne.s32.totalorder %s201, %s204
      %p213 = scmp.eq.s32.totalorder %s23, 1
      %p214 = por %p212, %p213
      %p215 = scmp.ne.s32.totalorder %s204, %s205
      %p216 = scmp.eq.s32.totalorder %s23, 0
      %p217 = por %p215, %p216
      %p218 = scmp.ne.s32.totalorder %s204, %s205
      %p219 = scmp.eq.s32.totalorder %s24, 1
      %p220 = por %p218, %p219
      %p222 = scmp.ne.s32.totalorder %s205, %s221
      %p223 = scmp.eq.s32.totalorder %s24, 0
      %p224 = por %p222, %p223
      %p225 = scmp.le.s32.totalorder 1, %s18
      %p226 = scmp.lt.s32.totalorder %s18, 3
      %p227 = pnand %p225, %p226
      %p228 = pneg %p227
      // Predicated region
      $region9: #{tpu_custom_call.1} parent=5 // pred_check
        _
      $region10: #{tpu_custom_call.1} parent=5 // pred_check_branch
        %230 = sbr.rel (%p227) target = $region12
      $region11: #{tpu_custom_call.1} parent=5 // pred_region
        %s231 = ssub.s32 %s18, 1
        // Predicated region
        $region13: #{tpu_custom_call.1} parent=11 // pred_check
          %p232 = pneg %p39
        $region14: #{tpu_custom_call.1} parent=11 // pred_check_branch
          %234 = sbr.rel (%p232) target = $region16
        $region15: #{tpu_custom_call.1} parent=11 // pred_region
          %s236 = ssub.s32 64, 64
          %237 = vsyncadd [#allocation3], %s236
          %s239 = sshll.u32 [#allocation2], 4
          %s240 = int_to_ptr.vmem [resolvable:$true] %s239
          %242 = dma.hbm_to_vmem [thread:$0]  %s0, 64, %s240, [#allocation3]
        $region16: #{tpu_custom_call.1} parent=11 // pred_fallthru
          _
        // Predicated region
        $region17: #{tpu_custom_call.1} parent=11 // pred_check
          %p243 = pneg %p86
        $region18: #{tpu_custom_call.1} parent=11 // pred_check_branch
          %245 = sbr.rel (%p243) target = $region20
        $region19: #{tpu_custom_call.1} parent=11 // pred_region
          _
        $region20: #{tpu_custom_call.1} parent=11 // pred_fallthru
          _
        // Predicated region
        $region21: #{tpu_custom_call.1} parent=11 // pred_check
          %p246 = pneg %p107
        $region22: #{tpu_custom_call.1} parent=11 // pred_check_branch
          %248 = sbr.rel (%p246) target = $region24
        $region23: #{tpu_custom_call.1} parent=11 // pred_region
          _
        $region24: #{tpu_custom_call.1} parent=11 // pred_fallthru
          _
        // Predicated region
        $region25: #{tpu_custom_call.1} parent=11 // pred_check
          %p249 = pneg %p128
        $region26: #{tpu_custom_call.1} parent=11 // pred_check_branch
          %251 = sbr.rel (%p249) target = $region28
        $region27: #{tpu_custom_call.1} parent=11 // pred_region
          _
        $region28: #{tpu_custom_call.1} parent=11 // pred_fallthru
          _
        // Predicated region
        $region29: #{tpu_custom_call.1} parent=11 // pred_check
          %p252 = pneg %p149
        $region30: #{tpu_custom_call.1} parent=11 // pred_check_branch
          %254 = sbr.rel (%p252) target = $region32
        $region31: #{tpu_custom_call.1} parent=11 // pred_region
          _
        $region32: #{tpu_custom_call.1} parent=11 // pred_fallthru
          _
        // Predicated region
        $region33: #{tpu_custom_call.1} parent=11 // pred_check
          %p255 = pneg %p170
        $region34: #{tpu_custom_call.1} parent=11 // pred_check_branch
          %257 = sbr.rel (%p255) target = $region36
        $region35: #{tpu_custom_call.1} parent=11 // pred_region
          _
        $region36: #{tpu_custom_call.1} parent=11 // pred_fallthru
          _
        // Predicated region
        $region37: #{tpu_custom_call.1} parent=11 // pred_check
          %p258 = pneg %p191
        $region38: #{tpu_custom_call.1} parent=11 // pred_check_branch
          %260 = sbr.rel (%p258) target = $region40
        $region39: #{tpu_custom_call.1} parent=11 // pred_region
          _
        $region40: #{tpu_custom_call.1} parent=11 // pred_fallthru
          _
      $region12: #{tpu_custom_call.1} parent=5 // pred_fallthru
        _
      %p261 = scmp.lt.s32.totalorder %s18, 2
      // Predicated region
      $region41: #{tpu_custom_call.1} parent=5 // pred_check
        %p262 = pneg %p261
      $region42: #{tpu_custom_call.1} parent=5 // pred_check_branch
        %264 = sbr.rel (%p262) target = $region44
      $region43: #{tpu_custom_call.1} parent=5 // pred_region
        // Predicated region
        $region45: #{tpu_custom_call.1} parent=43 // pred_check
          %p265 = pneg %p59
        $region46: #{tpu_custom_call.1} parent=43 // pred_check_branch
          %267 = sbr.rel (%p265) target = $region48
        $region47: #{tpu_custom_call.1} parent=43 // pred_region
          %s268 = smul.u32 2, %s18
          %p269 = scmp.lt.s32.totalorder %s268, 3
          %s270 = scalar_select %p269, %s268, 3
          %s271 = smul.addr %s270, 4
          %s272 = smul.addr %s271, 4
          %s273 = scalar_lea.vmem %s1, %s272
          %s274 = smul.u32 2, %s18
        $region48: #{tpu_custom_call.1} parent=43 // pred_fallthru
          _
      $region44: #{tpu_custom_call.1} parent=5 // pred_fallthru
        _
      %p275 = scmp.le.s32.totalorder 1, %s18
      %p276 = scmp.lt.s32.totalorder %s18, 3
      %p277 = pnand %p275, %p276
      %p278 = pneg %p277
      // Predicated region
      $region49: #{tpu_custom_call.1} parent=5 // pred_check
        _
      $region50: #{tpu_custom_call.1} parent=5 // pred_check_branch
        %280 = sbr.rel (%p277) target = $region52
      $region51: #{tpu_custom_call.1} parent=5 // pred_region
        %s281 = ssub.s32 %s18, 1
        // Predicated region
        $region53: #{tpu_custom_call.1} parent=51 // pred_check
          %p282 = pneg %p39
        $region54: #{tpu_custom_call.1} parent=51 // pred_check_branch
          %284 = sbr.rel (%p282) target = $region56
        $region55: #{tpu_custom_call.1} parent=51 // pred_region
          %285 = dma.done [#allocation3], 64
        $region56: #{tpu_custom_call.1} parent=51 // pred_fallthru
          _
        %p286 = pneg %p39
        %p287 = pneg %p36
        %s288 = smul.u32 2, %s23
        %p289 = scmp.lt.s32.totalorder %s288, 3
        %s290 = scalar_select %p289, %s288, 3
        %s291 = smul.addr %s290, 4
        %s292 = smul.addr %s291, 4
        %s293 = scalar_lea.vmem %s1, %s292
        %p294 = pneg %p65
        %p295 = pneg %p62
        %p296 = pneg %p86
        %p297 = pneg %p83
        %p298 = pneg %p107
        %p299 = pneg %p104
        %p300 = pneg %p128
        %p301 = pneg %p125
        %p302 = pneg %p149
        %p303 = pneg %p146
        %p304 = pneg %p170
        %p305 = pneg %p167
        %p306 = pneg %p191
        %p307 = pneg %p188
        %p308 = pneg %p217
        %p309 = pneg %p214
        %s310 = sand.u32 %s204, 1
        %s311 = scalar_lea.sflag [#allocation4], %s310
        %s312 = sand.u32 %s204, 1
        %s313 = smul.addr %s312, 192
        %s314 = scalar_lea.vmem [#allocation5], %s313
        %s315 = smul.u32 2, %s23
        %p316 = scmp.lt.s32.totalorder %s315, 3
        %s317 = scalar_select %p316, %s315, 3
        %s318 = smul.addr %s317, 4
        %s319 = smul.addr %s318, 4
        %s320 = scalar_lea.vmem %s1, %s319
        %s321 = smul.u32 2, %s23
        %s322 = smul.u32 2, %s23
        %v323 = vld [vmem:[#allocation2] sm:$0xf]
        %v324 = vld [vmem:[%s2] sm:$0xff]
        %v325 = vld [vmem:[%s2 + $0x8] sm:$0xff]
        %v326 = vld [vmem:[%s3] sm:$0xff]
        %v327 = vld [vmem:[%s3 + $0x8] sm:$0xff]
        %v328 = vld [vmem:[%s4] sm:$0xff]
        %v329 = vld [vmem:[%s4 + $0x8] sm:$0xff]
        %v330 = vld [vmem:[%s5] sm:$0xff]
        %v331 = vld [vmem:[%s5 + $0x8] sm:$0xff]
        %v332 = vld [vmem:[%s6] sm:$0xff]
        %v333 = vld [vmem:[%s7] sm:$0xff]
        %v334 = vld [vmem:[%s320] sm:$0xff]
        %v335 = vld [vmem:[%s320 + $0x8] sm:$0xff]
        %337 = vset.pattern.permute.xlu0 0
        %338 = vperm.xlu0 %337, %v326
        %v339 = vpop.permute.xlu0 %338
        %342 = vset.pattern.permute.xlu0 0
        %343 = vperm.xlu0 %342, %v327
        %v344 = vpop.permute.xlu0 %343
        %v348 = vcombine.high %v334, %v334
        %v349 = vcombine.high %v335, %v335
        %vm350 = vcmask 31744
        %v352 = vsel %vm350, %v324, 0
        %v355 = vsel %vm350, %v325, 0
        %vm357 = vcmask 1043456
        %v358 = vsel %vm357, %v334, 0
        %v360 = vsel %vm357, %v348, 0
        %v362 = vsel %vm357, %v335, 0
        %v364 = vsel %vm357, %v349, 0
        %366 = vmatprep.subr.mxu0 %v360
        %367 = vmatpush1.msra.mxu0 %v358
        %368 = vmatprep.subr.mxu0 0.0
        %369 = vmatpush1.msra.mxu0 0.0
        %370 = vmatprep.subr.mxu0 0.0
        %371 = vmatpush1.msra.mxu0 0.0
        %372 = vmatprep.subr.mxu0 0.0
        %373 = vmatpush1.msra.mxu0 0.0
        %374 = vmatprep.subr.mxu0 0.0
        %375 = vmatpush1.msra.mxu0 0.0
        %376 = vmatprep.subr.mxu0 0.0
        %377 = vmatpush1.msra.mxu0 0.0
        %378 = vmatprep.subr.mxu0 0.0
        %379 = vmatpush1.msra.mxu0 0.0
        %380 = vmatprep.subr.mxu0 0.0
        %381 = vmatpush1.msra.mxu0 0.0
        %382 = vmatprep.subr.mxu0 0.0
        %383 = vmatpush1.msra.mxu0 0.0
        %384 = vmatprep.subr.mxu0 0.0
        %385 = vmatpush1.msra.mxu0 0.0
        %386 = vmatprep.subr.mxu0 0.0
        %387 = vmatpush1.msra.mxu0 0.0
        %388 = vmatprep.subr.mxu0 0.0
        %389 = vmatpush1.msra.mxu0 0.0
        %390 = vmatprep.subr.mxu0 0.0
        %391 = vmatpush1.msra.mxu0 0.0
        %392 = vmatprep.subr.mxu0 0.0
        %393 = vmatpush1.msra.mxu0 0.0
        %394 = vmatprep.subr.mxu0 0.0
        %395 = vmatpush1.msra.mxu0 0.0
        %396 = vmatprep.subr.mxu0 0.0
        %397 = vmatpush1.msra.mxu0 0.0
        %398 = vmatprep.subr.mxu0 0.0
        %399 = vmatpush1.msra.mxu0 0.0
        %400 = vmatprep.subr.mxu0 0.0
        %401 = vmatpush1.msra.mxu0 0.0
        %402 = vmatprep.subr.mxu0 0.0
        %403 = vmatpush1.msra.mxu0 0.0
        %404 = vmatprep.subr.mxu0 0.0
        %405 = vmatpush1.msra.mxu0 0.0
        %406 = vmatprep.subr.mxu0 0.0
        %407 = vmatpush1.msra.mxu0 0.0
        %408 = vmatprep.subr.mxu0 0.0
        %409 = vmatpush1.msra.mxu0 0.0
        %410 = vmatprep.subr.mxu0 0.0
        %411 = vmatpush1.msra.mxu0 0.0
        %412 = vmatprep.subr.mxu0 0.0
        %413 = vmatpush1.msra.mxu0 0.0
        %414 = vmatprep.subr.mxu0 0.0
        %415 = vmatpush1.msra.mxu0 0.0
        %416 = vmatprep.subr.mxu0 0.0
        %417 = vmatpush1.msra.mxu0 0.0
        %418 = vmatprep.subr.mxu0 0.0
        %419 = vmatpush1.msra.mxu0 0.0
        %420 = vmatprep.subr.mxu0 0.0
        %421 = vmatpush1.msra.mxu0 0.0
        %422 = vmatprep.subr.mxu0 0.0
        %423 = vmatpush1.msra.mxu0 0.0
        %424 = vmatprep.subr.mxu0 0.0
        %425 = vmatpush1.msra.mxu0 0.0
        %426 = vmatprep.subr.mxu0 0.0
        %427 = vmatpush1.msra.mxu0 0.0
        %428 = vmatprep.subr.mxu0 0.0
        %429 = vmatpush1.msra.mxu0 0.0
        %430 = vmatprep.mubr.f32.mxu0 0.0
        %431 = vmatmul.mubr.f32.gmra.mrb[0].mxu0 %v352
        %v432 = vpop.f32.mrb[0].mxu0
        %v433 = vadd.f32 %v339, %v432
        %v434 = vpop.f32.mrb[0].mxu0
        %v435 = vadd.f32 %v339, %v434
        %436 = vmatprep.mubr.f32.mxu0 0.0
        %437 = vmatmul.mubr.f32.gmra.mrb[0].mxu0 %v355
        %v438 = vpop.f32.mrb[0].mxu0
        %v439 = vadd.f32 %v344, %v438
        %v440 = vpop.f32.mrb[0].mxu0
        %v441 = vadd.f32 %v344, %v440
        %442 = vdwg.mxu0
        %443 = vmatprep.subr.mxu0 %v364
        %444 = vmatpush1.msra.mxu0 %v362
        %445 = vmatprep.subr.mxu0 0.0
        %446 = vmatpush1.msra.mxu0 0.0
        %447 = vmatprep.subr.mxu0 0.0
        %448 = vmatpush1.msra.mxu0 0.0
        %449 = vmatprep.subr.mxu0 0.0
        %450 = vmatpush1.msra.mxu0 0.0
        %451 = vmatprep.subr.mxu0 0.0
        %452 = vmatpush1.msra.mxu0 0.0
        %453 = vmatprep.subr.mxu0 0.0
        %454 = vmatpush1.msra.mxu0 0.0
        %455 = vmatprep.subr.mxu0 0.0
        %456 = vmatpush1.msra.mxu0 0.0
        %457 = vmatprep.subr.mxu0 0.0
        %458 = vmatpush1.msra.mxu0 0.0
        %459 = vmatprep.subr.mxu0 0.0
        %460 = vmatpush1.msra.mxu0 0.0
        %461 = vmatprep.subr.mxu0 0.0
        %462 = vmatpush1.msra.mxu0 0.0
        %463 = vmatprep.subr.mxu0 0.0
        %464 = vmatpush1.msra.mxu0 0.0
        %465 = vmatprep.subr.mxu0 0.0
        %466 = vmatpush1.msra.mxu0 0.0
        %467 = vmatprep.subr.mxu0 0.0
        %468 = vmatpush1.msra.mxu0 0.0
        %469 = vmatprep.subr.mxu0 0.0
        %470 = vmatpush1.msra.mxu0 0.0
        %471 = vmatprep.subr.mxu0 0.0
        %472 = vmatpush1.msra.mxu0 0.0
        %473 = vmatprep.subr.mxu0 0.0
        %474 = vmatpush1.msra.mxu0 0.0
        %475 = vmatprep.subr.mxu0 0.0
        %476 = vmatpush1.msra.mxu0 0.0
        %477 = vmatprep.subr.mxu0 0.0
        %478 = vmatpush1.msra.mxu0 0.0
        %479 = vmatprep.subr.mxu0 0.0
        %480 = vmatpush1.msra.mxu0 0.0
        %481 = vmatprep.subr.mxu0 0.0
        %482 = vmatpush1.msra.mxu0 0.0
        %483 = vmatprep.subr.mxu0 0.0
        %484 = vmatpush1.msra.mxu0 0.0
        %485 = vmatprep.subr.mxu0 0.0
        %486 = vmatpush1.msra.mxu0 0.0
        %487 = vmatprep.subr.mxu0 0.0
        %488 = vmatpush1.msra.mxu0 0.0
        %489 = vmatprep.subr.mxu0 0.0
        %490 = vmatpush1.msra.mxu0 0.0
        %491 = vmatprep.subr.mxu0 0.0
        %492 = vmatpush1.msra.mxu0 0.0
        %493 = vmatprep.subr.mxu0 0.0
        %494 = vmatpush1.msra.mxu0 0.0
        %495 = vmatprep.subr.mxu0 0.0
        %496 = vmatpush1.msra.mxu0 0.0
        %497 = vmatprep.subr.mxu0 0.0
        %498 = vmatpush1.msra.mxu0 0.0
        %499 = vmatprep.subr.mxu0 0.0
        %500 = vmatpush1.msra.mxu0 0.0
        %501 = vmatprep.subr.mxu0 0.0
        %502 = vmatpush1.msra.mxu0 0.0
        %503 = vmatprep.subr.mxu0 0.0
        %504 = vmatpush1.msra.mxu0 0.0
        %505 = vmatprep.subr.mxu0 0.0
        %506 = vmatpush1.msra.mxu0 0.0
        %507 = vmatprep.mubr.f32.mxu0 0.0
        %508 = vmatmul.mubr.f32.gmra.mrb[0].mxu0 %v352
        %v509 = vpop.f32.mrb[0].mxu0
        %v510 = vadd.f32 %v339, %v509
        %v511 = vpop.f32.mrb[0].mxu0
        %v512 = vadd.f32 %v339, %v511
        %513 = vmatprep.mubr.f32.mxu0 0.0
        %514 = vmatmul.mubr.f32.gmra.mrb[0].mxu0 %v355
        %v515 = vpop.f32.mrb[0].mxu0
        %v516 = vadd.f32 %v344, %v515
        %v517 = vpop.f32.mrb[0].mxu0
        %v518 = vadd.f32 %v344, %v517
        %519 = vdwg.mxu0
        %v520 = vmax.f32 %v433, 0.0
        %v521 = vmax.f32 %v435, 0.0
        %v522 = vmax.f32 %v510, 0.0
        %v523 = vmax.f32 %v512, 0.0
        %v524 = vmax.f32 %v439, 0.0
        %v525 = vmax.f32 %v441, 0.0
        %v526 = vmax.f32 %v516, 0.0
        %v527 = vmax.f32 %v518, 0.0
        %v529 = vlaneseq
        %v530 = vshrl.u32 %v529, 7
        %v531 = vsub.s32 0, %v530
        %v532 = vrot.slane %v323, %v531
        %v533 = vlaneseq
        %v534 = vshrl.u32 %v533, 7
        %v535 = vsub.s32 1, %v534
        %v536 = vrot.slane %v323, %v535
        %v537 = vlaneseq
        %v538 = vshrl.u32 %v537, 7
        %v539 = vsub.s32 2, %v538
        %v540 = vrot.slane %v323, %v539
        %v541 = vlaneseq
        %v542 = vshrl.u32 %v541, 7
        %v543 = vsub.s32 3, %v542
        %v544 = vrot.slane %v323, %v543
        %v549 = vmul.f32 %v524, %v532
        %v550 = vmul.f32 %v525, %v536
        %v551 = vmul.f32 %v526, %v540
        %v552 = vmul.f32 %v527, %v544
        %557 = vrot.lane.b32.xlu0 %v549, 127
        %v558 = vpop.permute.xlu0 %557
        %559 = vrot.lane.b32.xlu0 %v550, 127
        %v560 = vpop.permute.xlu0 %559
        %561 = vrot.lane.b32.xlu0 %v551, 127
        %v562 = vpop.permute.xlu0 %561
        %563 = vrot.lane.b32.xlu0 %v552, 127
        %v564 = vpop.permute.xlu0 %563
        %vm565 = vcmask 1039360
        %v566 = vsel %vm565, %v558, %v560
        %v567 = vsel %vm565, %v560, %v562
        %v568 = vsel %vm565, %v562, %v564
        %572 = vrot.lane.b32.xlu0 %v549, 126
        %v573 = vpop.permute.xlu0 %572
        %574 = vrot.lane.b32.xlu0 %v550, 126
        %v575 = vpop.permute.xlu0 %574
        %576 = vrot.lane.b32.xlu0 %v551, 126
        %v577 = vpop.permute.xlu0 %576
        %578 = vrot.lane.b32.xlu0 %v552, 126
        %v579 = vpop.permute.xlu0 %578
        %vm580 = vcmask 1031168
        %v581 = vsel %vm580, %v573, %v575
        %v582 = vsel %vm580, %v575, %v577
        %v583 = vsel %vm580, %v577, %v579
        %587 = vrot.lane.b32.xlu0 %v549, 104
        %v588 = vpop.permute.xlu0 %587
        %589 = vrot.lane.b32.xlu0 %v550, 104
        %v590 = vpop.permute.xlu0 %589
        %591 = vrot.lane.b32.xlu0 %v551, 104
        %v592 = vpop.permute.xlu0 %591
        %593 = vrot.lane.b32.xlu0 %v552, 104
        %v594 = vpop.permute.xlu0 %593
        %vm595 = vcmask 850944
        %v596 = vsel %vm595, %v588, %v590
        %v597 = vsel %vm595, %v590, %v592
        %v598 = vsel %vm595, %v592, %v594
        %602 = vrot.lane.b32.xlu0 %v549, 103
        %v603 = vpop.permute.xlu0 %602
        %604 = vrot.lane.b32.xlu0 %v550, 103
        %v605 = vpop.permute.xlu0 %604
        %606 = vrot.lane.b32.xlu0 %v551, 103
        %v607 = vpop.permute.xlu0 %606
        %608 = vrot.lane.b32.xlu0 %v552, 103
        %v609 = vpop.permute.xlu0 %608
        %vm610 = vcmask 842752
        %v611 = vsel %vm610, %v603, %v605
        %v612 = vsel %vm610, %v605, %v607
        %v613 = vsel %vm610, %v607, %v609
        %617 = vrot.lane.b32.xlu0 %v549, 102
        %v618 = vpop.permute.xlu0 %617
        %619 = vrot.lane.b32.xlu0 %v550, 102
        %v620 = vpop.permute.xlu0 %619
        %621 = vrot.lane.b32.xlu0 %v551, 102
        %v622 = vpop.permute.xlu0 %621
        %623 = vrot.lane.b32.xlu0 %v552, 102
        %v624 = vpop.permute.xlu0 %623
        %vm625 = vcmask 834560
        %v626 = vsel %vm625, %v618, %v620
        %v627 = vsel %vm625, %v620, %v622
        %v628 = vsel %vm625, %v622, %v624
        %632 = vrot.lane.b32.xlu0 %v549, 80
        %v633 = vpop.permute.xlu0 %632
        %634 = vrot.lane.b32.xlu0 %v550, 80
        %v635 = vpop.permute.xlu0 %634
        %636 = vrot.lane.b32.xlu0 %v551, 80
        %v637 = vpop.permute.xlu0 %636
        %638 = vrot.lane.b32.xlu0 %v552, 80
        %v639 = vpop.permute.xlu0 %638
        %vm640 = vcmask 654336
        %v641 = vsel %vm640, %v633, %v635
        %v642 = vsel %vm640, %v635, %v637
        %v643 = vsel %vm640, %v637, %v639
        %647 = vrot.lane.b32.xlu0 %v549, 79
        %v648 = vpop.permute.xlu0 %647
        %649 = vrot.lane.b32.xlu0 %v550, 79
        %v650 = vpop.permute.xlu0 %649
        %651 = vrot.lane.b32.xlu0 %v551, 79
        %v652 = vpop.permute.xlu0 %651
        %653 = vrot.lane.b32.xlu0 %v552, 79
        %v654 = vpop.permute.xlu0 %653
        %vm655 = vcmask 646144
        %v656 = vsel %vm655, %v648, %v650
        %v657 = vsel %vm655, %v650, %v652
        %v658 = vsel %vm655, %v652, %v654
        %662 = vrot.lane.b32.xlu0 %v549, 78
        %v663 = vpop.permute.xlu0 %662
        %664 = vrot.lane.b32.xlu0 %v550, 78
        %v665 = vpop.permute.xlu0 %664
        %666 = vrot.lane.b32.xlu0 %v551, 78
        %v667 = vpop.permute.xlu0 %666
        %668 = vrot.lane.b32.xlu0 %v552, 78
        %v669 = vpop.permute.xlu0 %668
        %vm670 = vcmask 637952
        %v671 = vsel %vm670, %v663, %v665
        %v672 = vsel %vm670, %v665, %v667
        %v673 = vsel %vm670, %v667, %v669
        %678 = vset.pattern.permute.xlu0 0
        %679 = vperm.xlu0 %678, %v330
        %v680 = vpop.permute.xlu0 %679
        %683 = vset.pattern.permute.xlu0 0
        %684 = vperm.xlu0 %683, %v331
        %v685 = vpop.permute.xlu0 %684
        %vm687 = vcmask 588800
        %v689 = vsel %vm687, %v328, 0
        %v692 = vsel %vm687, %v329, 0
        %694 = vmatprep.subr.mxu0 %v550
        %695 = vmatpush1.msra.mxu0 %v549
        %696 = vmatprep.subr.mxu0 %v567
        %697 = vmatpush1.msra.mxu0 %v566
        %698 = vmatprep.subr.mxu0 %v582
        %699 = vmatpush1.msra.mxu0 %v581
        %700 = vmatprep.subr.mxu0 %v597
        %701 = vmatpush1.msra.mxu0 %v596
        %702 = vmatprep.subr.mxu0 %v612
        %703 = vmatpush1.msra.mxu0 %v611
        %704 = vmatprep.subr.mxu0 %v627
        %705 = vmatpush1.msra.mxu0 %v626
        %706 = vmatprep.subr.mxu0 %v642
        %707 = vmatpush1.msra.mxu0 %v641
        %708 = vmatprep.subr.mxu0 %v657
        %709 = vmatpush1.msra.mxu0 %v656
        %710 = vmatprep.subr.mxu0 %v672
        %711 = vmatpush1.msra.mxu0 %v671
        %712 = vmatprep.subr.mxu0 0.0
        %713 = vmatpush1.msra.mxu0 0.0
        %714 = vmatprep.subr.mxu0 0.0
        %715 = vmatpush1.msra.mxu0 0.0
        %716 = vmatprep.subr.mxu0 0.0
        %717 = vmatpush1.msra.mxu0 0.0
        %718 = vmatprep.subr.mxu0 0.0
        %719 = vmatpush1.msra.mxu0 0.0
        %720 = vmatprep.subr.mxu0 0.0
        %721 = vmatpush1.msra.mxu0 0.0
        %722 = vmatprep.subr.mxu0 0.0
        %723 = vmatpush1.msra.mxu0 0.0
        %724 = vmatprep.subr.mxu0 0.0
        %725 = vmatpush1.msra.mxu0 0.0
        %726 = vmatprep.subr.mxu0 0.0
        %727 = vmatpush1.msra.mxu0 0.0
        %728 = vmatprep.subr.mxu0 0.0
        %729 = vmatpush1.msra.mxu0 0.0
        %730 = vmatprep.subr.mxu0 0.0
        %731 = vmatpush1.msra.mxu0 0.0
        %732 = vmatprep.subr.mxu0 0.0
        %733 = vmatpush1.msra.mxu0 0.0
        %734 = vmatprep.subr.mxu0 0.0
        %735 = vmatpush1.msra.mxu0 0.0
        %736 = vmatprep.subr.mxu0 0.0
        %737 = vmatpush1.msra.mxu0 0.0
        %738 = vmatprep.subr.mxu0 0.0
        %739 = vmatpush1.msra.mxu0 0.0
        %740 = vmatprep.subr.mxu0 0.0
        %741 = vmatpush1.msra.mxu0 0.0
        %742 = vmatprep.subr.mxu0 0.0
        %743 = vmatpush1.msra.mxu0 0.0
        %744 = vmatprep.subr.mxu0 0.0
        %745 = vmatpush1.msra.mxu0 0.0
        %746 = vmatprep.subr.mxu0 0.0
        %747 = vmatpush1.msra.mxu0 0.0
        %748 = vmatprep.subr.mxu0 0.0
        %749 = vmatpush1.msra.mxu0 0.0
        %750 = vmatprep.subr.mxu0 0.0
        %751 = vmatpush1.msra.mxu0 0.0
        %752 = vmatprep.subr.mxu0 0.0
        %753 = vmatpush1.msra.mxu0 0.0
        %754 = vmatprep.subr.mxu0 0.0
        %755 = vmatpush1.msra.mxu0 0.0
        %756 = vmatprep.subr.mxu0 0.0
        %757 = vmatpush1.msra.mxu0 0.0
        %758 = vmatprep.mubr.f32.mxu0 0.0
        %759 = vmatmul.mubr.f32.gmra.mrb[0].mxu0 %v689
        %v760 = vpop.f32.mrb[0].mxu0
        %v761 = vadd.f32 %v680, %v760
        %v762 = vpop.f32.mrb[0].mxu0
        %v763 = vadd.f32 %v680, %v762
        %764 = vmatprep.mubr.f32.mxu0 0.0
        %765 = vmatmul.mubr.f32.gmra.mrb[0].mxu0 %v692
        %v766 = vpop.f32.mrb[0].mxu0
        %v767 = vadd.f32 %v685, %v766
        %v768 = vpop.f32.mrb[0].mxu0
        %v769 = vadd.f32 %v685, %v768
        %770 = vdwg.mxu0
        %771 = vmatprep.subr.mxu0 0.0
        %772 = vmatpush1.msra.mxu0 %v551
        %773 = vmatprep.subr.mxu0 0.0
        %774 = vmatpush1.msra.mxu0 %v568
        %775 = vmatprep.subr.mxu0 0.0
        %776 = vmatpush1.msra.mxu0 %v583
        %777 = vmatprep.subr.mxu0 0.0
        %778 = vmatpush1.msra.mxu0 %v598
        %779 = vmatprep.subr.mxu0 0.0
        %780 = vmatpush1.msra.mxu0 %v613
        %781 = vmatprep.subr.mxu0 0.0
        %782 = vmatpush1.msra.mxu0 %v628
        %783 = vmatprep.subr.mxu0 0.0
        %784 = vmatpush1.msra.mxu0 %v643
        %785 = vmatprep.subr.mxu0 0.0
        %786 = vmatpush1.msra.mxu0 %v658
        %787 = vmatprep.subr.mxu0 0.0
        %788 = vmatpush1.msra.mxu0 %v673
        %789 = vmatprep.subr.mxu0 0.0
        %790 = vmatpush1.msra.mxu0 0.0
        %791 = vmatprep.subr.mxu0 0.0
        %792 = vmatpush1.msra.mxu0 0.0
        %793 = vmatprep.subr.mxu0 0.0
        %794 = vmatpush1.msra.mxu0 0.0
        %795 = vmatprep.subr.mxu0 0.0
        %796 = vmatpush1.msra.mxu0 0.0
        %797 = vmatprep.subr.mxu0 0.0
        %798 = vmatpush1.msra.mxu0 0.0
        %799 = vmatprep.subr.mxu0 0.0
        %800 = vmatpush1.msra.mxu0 0.0
        %801 = vmatprep.subr.mxu0 0.0
        %802 = vmatpush1.msra.mxu0 0.0
        %803 = vmatprep.subr.mxu0 0.0
        %804 = vmatpush1.msra.mxu0 0.0
        %805 = vmatprep.subr.mxu0 0.0
        %806 = vmatpush1.msra.mxu0 0.0
        %807 = vmatprep.subr.mxu0 0.0
        %808 = vmatpush1.msra.mxu0 0.0
        %809 = vmatprep.subr.mxu0 0.0
        %810 = vmatpush1.msra.mxu0 0.0
        %811 = vmatprep.subr.mxu0 0.0
        %812 = vmatpush1.msra.mxu0 0.0
        %813 = vmatprep.subr.mxu0 0.0
        %814 = vmatpush1.msra.mxu0 0.0
        %815 = vmatprep.subr.mxu0 0.0
        %816 = vmatpush1.msra.mxu0 0.0
        %817 = vmatprep.subr.mxu0 0.0
        %818 = vmatpush1.msra.mxu0 0.0
        %819 = vmatprep.subr.mxu0 0.0
        %820 = vmatpush1.msra.mxu0 0.0
        %821 = vmatprep.subr.mxu0 0.0
        %822 = vmatpush1.msra.mxu0 0.0
        %823 = vmatprep.subr.mxu0 0.0
        %824 = vmatpush1.msra.mxu0 0.0
        %825 = vmatprep.subr.mxu0 0.0
        %826 = vmatpush1.msra.mxu0 0.0
        %827 = vmatprep.subr.mxu0 0.0
        %828 = vmatpush1.msra.mxu0 0.0
        %829 = vmatprep.subr.mxu0 0.0
        %830 = vmatpush1.msra.mxu0 0.0
        %831 = vmatprep.subr.mxu0 0.0
        %832 = vmatpush1.msra.mxu0 0.0
        %833 = vmatprep.subr.mxu0 0.0
        %834 = vmatpush1.msra.mxu0 0.0
        %835 = vmatprep.mubr.f32.mxu0 0.0
        %836 = vmatmul.mubr.f32.gmra.mrb[0].mxu0 %v689
        %v837 = vpop.f32.mrb[0].mxu0
        %v838 = vadd.f32 %v680, %v837
        %v839 = vpop.f32.mrb[0].mxu0
        %840 = vmatprep.mubr.f32.mxu0 0.0
        %841 = vmatmul.mubr.f32.gmra.mrb[0].mxu0 %v692
        %v842 = vpop.f32.mrb[0].mxu0
        %v843 = vadd.f32 %v685, %v842
        %v844 = vpop.f32.mrb[0].mxu0
        %845 = vdwg.mxu0
        %v846 = vmax.f32 %v761, 0.0
        %v847 = vmax.f32 %v763, 0.0
        %v848 = vmax.f32 %v838, 0.0
        %v849 = vmax.f32 %v767, 0.0
        %v850 = vmax.f32 %v769, 0.0
        %v851 = vmax.f32 %v843, 0.0
        %vm852 = vcmp.gt.f32.partialorder %v323, 0.0
        %v853 = vsel %vm852, 1, 0
        %v854 = vlaneseq
        %v855 = vshrl.u32 %v854, 7
        %v856 = vsub.s32 0, %v855
        %v857 = vrot.slane %v853, %v856
        %v858 = vlaneseq
        %v859 = vshrl.u32 %v858, 7
        %v860 = vsub.s32 1, %v859
        %v861 = vrot.slane %v853, %v860
        %v862 = vlaneseq
        %v863 = vshrl.u32 %v862, 7
        %v864 = vsub.s32 2, %v863
        %v865 = vrot.slane %v853, %v864
        %v866 = vlaneseq
        %v867 = vshrl.u32 %v866, 7
        %v868 = vsub.s32 3, %v867
        %v869 = vrot.slane %v853, %v868
        %vm870 = vcmp.eq.s32.totalorder %v857, 1
        %vm871 = vcmp.eq.s32.totalorder %v861, 1
        %vm872 = vcmp.eq.s32.totalorder %v865, 1
        %vm873 = vcmp.eq.s32.totalorder %v869, 1
        %v876 = vsel %vm870, %v334, -1e+30
        %v877 = vsel %vm871, %v348, -1e+30
        %v878 = vsel %vm872, %v335, -1e+30
        %v879 = vsel %vm873, %v349, -1e+30
        %884 = vrot.lane.b32.xlu0 %v876, 127
        %v885 = vpop.permute.xlu0 %884
        %886 = vrot.lane.b32.xlu0 %v877, 127
        %v887 = vpop.permute.xlu0 %886
        %888 = vrot.lane.b32.xlu0 %v878, 127
        %v889 = vpop.permute.xlu0 %888
        %890 = vrot.lane.b32.xlu0 %v879, 127
        %v891 = vpop.permute.xlu0 %890
        %v892 = vsel %vm565, %v885, %v887
        %v893 = vsel %vm565, %v887, %v889
        %v894 = vsel %vm565, %v889, %v891
        %v899 = vmax.f32 %v876, %v892
        %v900 = vmax.f32 %v877, %v893
        %v901 = vmax.f32 %v878, %v894
        %v902 = vmax.f32 %v879, %v891
        %903 = vrot.lane.b32.xlu0 %v876, 126
        %v904 = vpop.permute.xlu0 %903
        %905 = vrot.lane.b32.xlu0 %v877, 126
        %v906 = vpop.permute.xlu0 %905
        %907 = vrot.lane.b32.xlu0 %v878, 126
        %v908 = vpop.permute.xlu0 %907
        %909 = vrot.lane.b32.xlu0 %v879, 126
        %v910 = vpop.permute.xlu0 %909
        %v911 = vsel %vm580, %v904, %v906
        %v912 = vsel %vm580, %v906, %v908
        %v913 = vsel %vm580, %v908, %v910
        %v918 = vmax.f32 %v899, %v911
        %v919 = vmax.f32 %v900, %v912
        %v920 = vmax.f32 %v901, %v913
        %v921 = vmax.f32 %v902, %v910
        %926 = vrot.lane.b32.xlu0 %v918, 104
        %v927 = vpop.permute.xlu0 %926
        %928 = vrot.lane.b32.xlu0 %v919, 104
        %v929 = vpop.permute.xlu0 %928
        %930 = vrot.lane.b32.xlu0 %v920, 104
        %v931 = vpop.permute.xlu0 %930
        %932 = vrot.lane.b32.xlu0 %v921, 104
        %v933 = vpop.permute.xlu0 %932
        %v934 = vsel %vm595, %v927, %v929
        %v935 = vsel %vm595, %v929, %v931
        %v936 = vsel %vm595, %v931, %v933
        %v940 = vmax.f32 %v918, %v934
        %v941 = vmax.f32 %v919, %v935
        %v942 = vmax.f32 %v920, %v936
        %943 = vrot.lane.b32.xlu0 %v918, 80
        %v944 = vpop.permute.xlu0 %943
        %945 = vrot.lane.b32.xlu0 %v919, 80
        %v946 = vpop.permute.xlu0 %945
        %947 = vrot.lane.b32.xlu0 %v920, 80
        %v948 = vpop.permute.xlu0 %947
        %949 = vrot.lane.b32.xlu0 %v921, 80
        %v950 = vpop.permute.xlu0 %949
        %v951 = vsel %vm640, %v944, %v946
        %v952 = vsel %vm640, %v946, %v948
        %v953 = vsel %vm640, %v948, %v950
        %v957 = vmax.f32 %v940, %v951
        %v958 = vmax.f32 %v941, %v952
        %v959 = vmax.f32 %v942, %v953
        %961 = vset.pattern.permute.xlu0 0
        %962 = vperm.xlu0 %961, %v333
        %v963 = vpop.permute.xlu0 %962
        %v966 = vsel %vm350, %v332, 0
        %v969 = vsel %vm357, %v957, 0
        %v972 = vsel %vm357, %v958, 0
        %v975 = vsel %vm357, %v959, 0
        %977 = vmatprep.subr.mxu0 %v972
        %978 = vmatpush1.msra.mxu0 %v969
        %979 = vmatprep.subr.mxu0 0.0
        %980 = vmatpush1.msra.mxu0 0.0
        %981 = vmatprep.subr.mxu0 0.0
        %982 = vmatpush1.msra.mxu0 0.0
        %983 = vmatprep.subr.mxu0 0.0
        %984 = vmatpush1.msra.mxu0 0.0
        %985 = vmatprep.subr.mxu0 0.0
        %986 = vmatpush1.msra.mxu0 0.0
        %987 = vmatprep.subr.mxu0 0.0
        %988 = vmatpush1.msra.mxu0 0.0
        %989 = vmatprep.subr.mxu0 0.0
        %990 = vmatpush1.msra.mxu0 0.0
        %991 = vmatprep.subr.mxu0 0.0
        %992 = vmatpush1.msra.mxu0 0.0
        %993 = vmatprep.subr.mxu0 0.0
        %994 = vmatpush1.msra.mxu0 0.0
        %995 = vmatprep.subr.mxu0 0.0
        %996 = vmatpush1.msra.mxu0 0.0
        %997 = vmatprep.subr.mxu0 0.0
        %998 = vmatpush1.msra.mxu0 0.0
        %999 = vmatprep.subr.mxu0 0.0
        %1000 = vmatpush1.msra.mxu0 0.0
        %1001 = vmatprep.subr.mxu0 0.0
        %1002 = vmatpush1.msra.mxu0 0.0
        %1003 = vmatprep.subr.mxu0 0.0
        %1004 = vmatpush1.msra.mxu0 0.0
        %1005 = vmatprep.subr.mxu0 0.0
        %1006 = vmatpush1.msra.mxu0 0.0
        %1007 = vmatprep.subr.mxu0 0.0
        %1008 = vmatpush1.msra.mxu0 0.0
        %1009 = vmatprep.subr.mxu0 0.0
        %1010 = vmatpush1.msra.mxu0 0.0
        %1011 = vmatprep.subr.mxu0 0.0
        %1012 = vmatpush1.msra.mxu0 0.0
        %1013 = vmatprep.subr.mxu0 0.0
        %1014 = vmatpush1.msra.mxu0 0.0
        %1015 = vmatprep.subr.mxu0 0.0
        %1016 = vmatpush1.msra.mxu0 0.0
        %1017 = vmatprep.subr.mxu0 0.0
        %1018 = vmatpush1.msra.mxu0 0.0
        %1019 = vmatprep.subr.mxu0 0.0
        %1020 = vmatpush1.msra.mxu0 0.0
        %1021 = vmatprep.subr.mxu0 0.0
        %1022 = vmatpush1.msra.mxu0 0.0
        %1023 = vmatprep.subr.mxu0 0.0
        %1024 = vmatpush1.msra.mxu0 0.0
        %1025 = vmatprep.subr.mxu0 0.0
        %1026 = vmatpush1.msra.mxu0 0.0
        %1027 = vmatprep.subr.mxu0 0.0
        %1028 = vmatpush1.msra.mxu0 0.0
        %1029 = vmatprep.subr.mxu0 0.0
        %1030 = vmatpush1.msra.mxu0 0.0
        %1031 = vmatprep.subr.mxu0 0.0
        %1032 = vmatpush1.msra.mxu0 0.0
        %1033 = vmatprep.subr.mxu0 0.0
        %1034 = vmatpush1.msra.mxu0 0.0
        %1035 = vmatprep.subr.mxu0 0.0
        %1036 = vmatpush1.msra.mxu0 0.0
        %1037 = vmatprep.subr.mxu0 0.0
        %1038 = vmatpush1.msra.mxu0 0.0
        %1039 = vmatprep.subr.mxu0 0.0
        %1040 = vmatpush1.msra.mxu0 0.0
        %1041 = vmatprep.mubr.f32.mxu0 0.0
        %1042 = vmatmul.mubr.f32.gmra.mrb[0].mxu0 %v966
        %v1043 = vpop.f32.mrb[0].mxu0
        %v1044 = vadd.f32 %v963, %v1043
        %v1045 = vpop.f32.mrb[0].mxu0
        %v1046 = vadd.f32 %v963, %v1045
        %1047 = vdwg.mxu0
        %1048 = vmatprep.subr.mxu0 0.0
        %1049 = vmatpush1.msra.mxu0 %v975
        %1050 = vmatprep.subr.mxu0 0.0
        %1051 = vmatpush1.msra.mxu0 0.0
        %1052 = vmatprep.subr.mxu0 0.0
        %1053 = vmatpush1.msra.mxu0 0.0
        %1054 = vmatprep.subr.mxu0 0.0
        %1055 = vmatpush1.msra.mxu0 0.0
        %1056 = vmatprep.subr.mxu0 0.0
        %1057 = vmatpush1.msra.mxu0 0.0
        %1058 = vmatprep.subr.mxu0 0.0
        %1059 = vmatpush1.msra.mxu0 0.0
        %1060 = vmatprep.subr.mxu0 0.0
        %1061 = vmatpush1.msra.mxu0 0.0
        %1062 = vmatprep.subr.mxu0 0.0
        %1063 = vmatpush1.msra.mxu0 0.0
        %1064 = vmatprep.subr.mxu0 0.0
        %1065 = vmatpush1.msra.mxu0 0.0
        %1066 = vmatprep.subr.mxu0 0.0
        %1067 = vmatpush1.msra.mxu0 0.0
        %1068 = vmatprep.subr.mxu0 0.0
        %1069 = vmatpush1.msra.mxu0 0.0
        %1070 = vmatprep.subr.mxu0 0.0
        %1071 = vmatpush1.msra.mxu0 0.0
        %1072 = vmatprep.subr.mxu0 0.0
        %1073 = vmatpush1.msra.mxu0 0.0
        %1074 = vmatprep.subr.mxu0 0.0
        %1075 = vmatpush1.msra.mxu0 0.0
        %1076 = vmatprep.subr.mxu0 0.0
        %1077 = vmatpush1.msra.mxu0 0.0
        %1078 = vmatprep.subr.mxu0 0.0
        %1079 = vmatpush1.msra.mxu0 0.0
        %1080 = vmatprep.subr.mxu0 0.0
        %1081 = vmatpush1.msra.mxu0 0.0
        %1082 = vmatprep.subr.mxu0 0.0
        %1083 = vmatpush1.msra.mxu0 0.0
        %1084 = vmatprep.subr.mxu0 0.0
        %1085 = vmatpush1.msra.mxu0 0.0
        %1086 = vmatprep.subr.mxu0 0.0
        %1087 = vmatpush1.msra.mxu0 0.0
        %1088 = vmatprep.subr.mxu0 0.0
        %1089 = vmatpush1.msra.mxu0 0.0
        %1090 = vmatprep.subr.mxu0 0.0
        %1091 = vmatpush1.msra.mxu0 0.0
        %1092 = vmatprep.subr.mxu0 0.0
        %1093 = vmatpush1.msra.mxu0 0.0
        %1094 = vmatprep.subr.mxu0 0.0
        %1095 = vmatpush1.msra.mxu0 0.0
        %1096 = vmatprep.subr.mxu0 0.0
        %1097 = vmatpush1.msra.mxu0 0.0
        %1098 = vmatprep.subr.mxu0 0.0
        %1099 = vmatpush1.msra.mxu0 0.0
        %1100 = vmatprep.subr.mxu0 0.0
        %1101 = vmatpush1.msra.mxu0 0.0
        %1102 = vmatprep.subr.mxu0 0.0
        %1103 = vmatpush1.msra.mxu0 0.0
        %1104 = vmatprep.subr.mxu0 0.0
        %1105 = vmatpush1.msra.mxu0 0.0
        %1106 = vmatprep.subr.mxu0 0.0
        %1107 = vmatpush1.msra.mxu0 0.0
        %1108 = vmatprep.subr.mxu0 0.0
        %1109 = vmatpush1.msra.mxu0 0.0
        %1110 = vmatprep.subr.mxu0 0.0
        %1111 = vmatpush1.msra.mxu0 0.0
        %1112 = vmatprep.mubr.f32.mxu0 0.0
        %1113 = vmatmul.mubr.f32.gmra.mrb[0].mxu0 %v966
        %v1114 = vpop.f32.mrb[0].mxu0
        %v1115 = vadd.f32 %v963, %v1114
        %v1116 = vpop.f32.mrb[0].mxu0
        %1117 = vdwg.mxu0
        %v1118 = vmax.f32 %v1044, 0.0
        %v1119 = vmax.f32 %v1046, 0.0
        %v1120 = vmax.f32 %v1115, 0.0
        %1125 = vrot.lane.b32.xlu0 %v520, 103
        %v1126 = vpop.permute.xlu0 %1125
        %1127 = vrot.lane.b32.xlu0 %v521, 103
        %v1128 = vpop.permute.xlu0 %1127
        %1129 = vrot.lane.b32.xlu0 %v522, 103
        %v1130 = vpop.permute.xlu0 %1129
        %1131 = vrot.lane.b32.xlu0 %v523, 103
        %v1132 = vpop.permute.xlu0 %1131
        %v1133 = vsel %vm610, %v1126, %v1128
        %v1134 = vsel %vm610, %v1128, %v1130
        %v1135 = vsel %vm610, %v1130, %v1132
        %1139 = vst [vmem:[%s314] sm:$0xff] %v1133
        %1140 = vst [vmem:[%s314 + $0x8] sm:$0xff] %v1134
        %1141 = vst [vmem:[%s314 + $0x10] sm:$0xff] %v1135
        %1142 = vst [vmem:[%s314 + $0x18] sm:$0xff] %v846
        %1143 = vst [vmem:[%s314 + $0x20] sm:$0xff] %v847
        %1144 = vst [vmem:[%s314 + $0x28] sm:$0xff] %v848
        %1145 = vst [vmem:[%s314 + $0x30] sm:$0xff] %v849
        %1146 = vst [vmem:[%s314 + $0x38] sm:$0xff] %v850
        %1147 = vst [vmem:[%s314 + $0x40] sm:$0xff] %v851
        %1148 = vst [vmem:[%s314 + $0x48] sm:$0xff] %v1118
        %1149 = vst [vmem:[%s314 + $0x50] sm:$0xff] %v1119
        %1150 = vst [vmem:[%s314 + $0x58] sm:$0xff] %v1120
        %s1151 = scalar_lea.vmem %s320, 16
        %v1152 = vld [vmem:[%s1151] sm:$0xff]
        %v1153 = vld [vmem:[%s1151 + $0x8] sm:$0xff]
        %v1156 = vcombine.high %v1152, %v1152
        %v1157 = vcombine.high %v1153, %v1153
        %v1158 = vsel %vm357, %v1152, 0
        %v1160 = vsel %vm357, %v1156, 0
        %v1162 = vsel %vm357, %v1153, 0
        %v1164 = vsel %vm357, %v1157, 0
        %1166 = vmatprep.subr.mxu0 %v1160
        %1167 = vmatpush1.msra.mxu0 %v1158
        %1168 = vmatprep.subr.mxu0 0.0
        %1169 = vmatpush1.msra.mxu0 0.0
        %1170 = vmatprep.subr.mxu0 0.0
        %1171 = vmatpush1.msra.mxu0 0.0
        %1172 = vmatprep.subr.mxu0 0.0
        %1173 = vmatpush1.msra.mxu0 0.0
        %1174 = vmatprep.subr.mxu0 0.0
        %1175 = vmatpush1.msra.mxu0 0.0
        %1176 = vmatprep.subr.mxu0 0.0
        %1177 = vmatpush1.msra.mxu0 0.0
        %1178 = vmatprep.subr.mxu0 0.0
        %1179 = vmatpush1.msra.mxu0 0.0
        %1180 = vmatprep.subr.mxu0 0.0
        %1181 = vmatpush1.msra.mxu0 0.0
        %1182 = vmatprep.subr.mxu0 0.0
        %1183 = vmatpush1.msra.mxu0 0.0
        %1184 = vmatprep.subr.mxu0 0.0
        %1185 = vmatpush1.msra.mxu0 0.0
        %1186 = vmatprep.subr.mxu0 0.0
        %1187 = vmatpush1.msra.mxu0 0.0
        %1188 = vmatprep.subr.mxu0 0.0
        %1189 = vmatpush1.msra.mxu0 0.0
        %1190 = vmatprep.subr.mxu0 0.0
        %1191 = vmatpush1.msra.mxu0 0.0
        %1192 = vmatprep.subr.mxu0 0.0
        %1193 = vmatpush1.msra.mxu0 0.0
        %1194 = vmatprep.subr.mxu0 0.0
        %1195 = vmatpush1.msra.mxu0 0.0
        %1196 = vmatprep.subr.mxu0 0.0
        %1197 = vmatpush1.msra.mxu0 0.0
        %1198 = vmatprep.subr.mxu0 0.0
        %1199 = vmatpush1.msra.mxu0 0.0
        %1200 = vmatprep.subr.mxu0 0.0
        %1201 = vmatpush1.msra.mxu0 0.0
        %1202 = vmatprep.subr.mxu0 0.0
        %1203 = vmatpush1.msra.mxu0 0.0
        %1204 = vmatprep.subr.mxu0 0.0
        %1205 = vmatpush1.msra.mxu0 0.0
        %1206 = vmatprep.subr.mxu0 0.0
        %1207 = vmatpush1.msra.mxu0 0.0
        %1208 = vmatprep.subr.mxu0 0.0
        %1209 = vmatpush1.msra.mxu0 0.0
        %1210 = vmatprep.subr.mxu0 0.0
        %1211 = vmatpush1.msra.mxu0 0.0
        %1212 = vmatprep.subr.mxu0 0.0
        %1213 = vmatpush1.msra.mxu0 0.0
        %1214 = vmatprep.subr.mxu0 0.0
        %1215 = vmatpush1.msra.mxu0 0.0
        %1216 = vmatprep.subr.mxu0 0.0
        %1217 = vmatpush1.msra.mxu0 0.0
        %1218 = vmatprep.subr.mxu0 0.0
        %1219 = vmatpush1.msra.mxu0 0.0
        %1220 = vmatprep.subr.mxu0 0.0
        %1221 = vmatpush1.msra.mxu0 0.0
        %1222 = vmatprep.subr.mxu0 0.0
        %1223 = vmatpush1.msra.mxu0 0.0
        %1224 = vmatprep.subr.mxu0 0.0
        %1225 = vmatpush1.msra.mxu0 0.0
        %1226 = vmatprep.subr.mxu0 0.0
        %1227 = vmatpush1.msra.mxu0 0.0
        %1228 = vmatprep.subr.mxu0 0.0
        %1229 = vmatpush1.msra.mxu0 0.0
        %1230 = vmatprep.mubr.f32.mxu0 0.0
        %1231 = vmatmul.mubr.f32.gmra.mrb[0].mxu0 %v352
        %v1232 = vpop.f32.mrb[0].mxu0
        %v1233 = vadd.f32 %v339, %v1232
        %v1234 = vpop.f32.mrb[0].mxu0
        %v1235 = vadd.f32 %v339, %v1234
        %1236 = vmatprep.mubr.f32.mxu0 0.0
        %1237 = vmatmul.mubr.f32.gmra.mrb[0].mxu0 %v355
        %v1238 = vpop.f32.mrb[0].mxu0
        %v1239 = vadd.f32 %v344, %v1238
        %v1240 = vpop.f32.mrb[0].mxu0
        %v1241 = vadd.f32 %v344, %v1240
        %1242 = vdwg.mxu0
        %1243 = vmatprep.subr.mxu0 %v1164
        %1244 = vmatpush1.msra.mxu0 %v1162
        %1245 = vmatprep.subr.mxu0 0.0
        %1246 = vmatpush1.msra.mxu0 0.0
        %1247 = vmatprep.subr.mxu0 0.0
        %1248 = vmatpush1.msra.mxu0 0.0
        %1249 = vmatprep.subr.mxu0 0.0
        %1250 = vmatpush1.msra.mxu0 0.0
        %1251 = vmatprep.subr.mxu0 0.0
        %1252 = vmatpush1.msra.mxu0 0.0
        %1253 = vmatprep.subr.mxu0 0.0
        %1254 = vmatpush1.msra.mxu0 0.0
        %1255 = vmatprep.subr.mxu0 0.0
        %1256 = vmatpush1.msra.mxu0 0.0
        %1257 = vmatprep.subr.mxu0 0.0
        %1258 = vmatpush1.msra.mxu0 0.0
        %1259 = vmatprep.subr.mxu0 0.0
        %1260 = vmatpush1.msra.mxu0 0.0
        %1261 = vmatprep.subr.mxu0 0.0
        %1262 = vmatpush1.msra.mxu0 0.0
        %1263 = vmatprep.subr.mxu0 0.0
        %1264 = vmatpush1.msra.mxu0 0.0
        %1265 = vmatprep.subr.mxu0 0.0
        %1266 = vmatpush1.msra.mxu0 0.0
        %1267 = vmatprep.subr.mxu0 0.0
        %1268 = vmatpush1.msra.mxu0 0.0
        %1269 = vmatprep.subr.mxu0 0.0
        %1270 = vmatpush1.msra.mxu0 0.0
        %1271 = vmatprep.subr.mxu0 0.0
        %1272 = vmatpush1.msra.mxu0 0.0
        %1273 = vmatprep.subr.mxu0 0.0
        %1274 = vmatpush1.msra.mxu0 0.0
        %1275 = vmatprep.subr.mxu0 0.0
        %1276 = vmatpush1.msra.mxu0 0.0
        %1277 = vmatprep.subr.mxu0 0.0
        %1278 = vmatpush1.msra.mxu0 0.0
        %1279 = vmatprep.subr.mxu0 0.0
        %1280 = vmatpush1.msra.mxu0 0.0
        %1281 = vmatprep.subr.mxu0 0.0
        %1282 = vmatpush1.msra.mxu0 0.0
        %1283 = vmatprep.subr.mxu0 0.0
        %1284 = vmatpush1.msra.mxu0 0.0
        %1285 = vmatprep.subr.mxu0 0.0
        %1286 = vmatpush1.msra.mxu0 0.0
        %1287 = vmatprep.subr.mxu0 0.0
        %1288 = vmatpush1.msra.mxu0 0.0
        %1289 = vmatprep.subr.mxu0 0.0
        %1290 = vmatpush1.msra.mxu0 0.0
        %1291 = vmatprep.subr.mxu0 0.0
        %1292 = vmatpush1.msra.mxu0 0.0
        %1293 = vmatprep.subr.mxu0 0.0
        %1294 = vmatpush1.msra.mxu0 0.0
        %1295 = vmatprep.subr.mxu0 0.0
        %1296 = vmatpush1.msra.mxu0 0.0
        %1297 = vmatprep.subr.mxu0 0.0
        %1298 = vmatpush1.msra.mxu0 0.0
        %1299 = vmatprep.subr.mxu0 0.0
        %1300 = vmatpush1.msra.mxu0 0.0
        %1301 = vmatprep.subr.mxu0 0.0
        %1302 = vmatpush1.msra.mxu0 0.0
        %1303 = vmatprep.subr.mxu0 0.0
        %1304 = vmatpush1.msra.mxu0 0.0
        %1305 = vmatprep.subr.mxu0 0.0
        %1306 = vmatpush1.msra.mxu0 0.0
        %1307 = vmatprep.mubr.f32.mxu0 0.0
        %1308 = vmatmul.mubr.f32.gmra.mrb[0].mxu0 %v352
        %v1309 = vpop.f32.mrb[0].mxu0
        %v1310 = vadd.f32 %v339, %v1309
        %v1311 = vpop.f32.mrb[0].mxu0
        %v1312 = vadd.f32 %v339, %v1311
        %1313 = vmatprep.mubr.f32.mxu0 0.0
        %1314 = vmatmul.mubr.f32.gmra.mrb[0].mxu0 %v355
        %v1315 = vpop.f32.mrb[0].mxu0
        %v1316 = vadd.f32 %v344, %v1315
        %v1317 = vpop.f32.mrb[0].mxu0
        %v1318 = vadd.f32 %v344, %v1317
        %1319 = vdwg.mxu0
        %v1320 = vmax.f32 %v1233, 0.0
        %v1321 = vmax.f32 %v1235, 0.0
        %v1322 = vmax.f32 %v1310, 0.0
        %v1323 = vmax.f32 %v1312, 0.0
        %v1324 = vmax.f32 %v1239, 0.0
        %v1325 = vmax.f32 %v1241, 0.0
        %v1326 = vmax.f32 %v1316, 0.0
        %v1327 = vmax.f32 %v1318, 0.0
        %v1328 = vmul.f32 %v1324, %v532
        %v1329 = vmul.f32 %v1325, %v536
        %v1330 = vmul.f32 %v1326, %v540
        %v1331 = vmul.f32 %v1327, %v544
        %1336 = vrot.lane.b32.xlu0 %v1328, 127
        %v1337 = vpop.permute.xlu0 %1336
        %1338 = vrot.lane.b32.xlu0 %v1329, 127
        %v1339 = vpop.permute.xlu0 %1338
        %1340 = vrot.lane.b32.xlu0 %v1330, 127
        %v1341 = vpop.permute.xlu0 %1340
        %1342 = vrot.lane.b32.xlu0 %v1331, 127
        %v1343 = vpop.permute.xlu0 %1342
        %v1344 = vsel %vm565, %v1337, %v1339
        %v1345 = vsel %vm565, %v1339, %v1341
        %v1346 = vsel %vm565, %v1341, %v1343
        %1350 = vrot.lane.b32.xlu0 %v1328, 126
        %v1351 = vpop.permute.xlu0 %1350
        %1352 = vrot.lane.b32.xlu0 %v1329, 126
        %v1353 = vpop.permute.xlu0 %1352
        %1354 = vrot.lane.b32.xlu0 %v1330, 126
        %v1355 = vpop.permute.xlu0 %1354
        %1356 = vrot.lane.b32.xlu0 %v1331, 126
        %v1357 = vpop.permute.xlu0 %1356
        %v1358 = vsel %vm580, %v1351, %v1353
        %v1359 = vsel %vm580, %v1353, %v1355
        %v1360 = vsel %vm580, %v1355, %v1357
        %1364 = vrot.lane.b32.xlu0 %v1328, 104
        %v1365 = vpop.permute.xlu0 %1364
        %1366 = vrot.lane.b32.xlu0 %v1329, 104
        %v1367 = vpop.permute.xlu0 %1366
        %1368 = vrot.lane.b32.xlu0 %v1330, 104
        %v1369 = vpop.permute.xlu0 %1368
        %1370 = vrot.lane.b32.xlu0 %v1331, 104
        %v1371 = vpop.permute.xlu0 %1370
        %v1372 = vsel %vm595, %v1365, %v1367
        %v1373 = vsel %vm595, %v1367, %v1369
        %v1374 = vsel %vm595, %v1369, %v1371
        %1378 = vrot.lane.b32.xlu0 %v1328, 103
        %v1379 = vpop.permute.xlu0 %1378
        %1380 = vrot.lane.b32.xlu0 %v1329, 103
        %v1381 = vpop.permute.xlu0 %1380
        %1382 = vrot.lane.b32.xlu0 %v1330, 103
        %v1383 = vpop.permute.xlu0 %1382
        %1384 = vrot.lane.b32.xlu0 %v1331, 103
        %v1385 = vpop.permute.xlu0 %1384
        %v1386 = vsel %vm610, %v1379, %v1381
        %v1387 = vsel %vm610, %v1381, %v1383
        %v1388 = vsel %vm610, %v1383, %v1385
        %1392 = vrot.lane.b32.xlu0 %v1328, 102
        %v1393 = vpop.permute.xlu0 %1392
        %1394 = vrot.lane.b32.xlu0 %v1329, 102
        %v1395 = vpop.permute.xlu0 %1394
        %1396 = vrot.lane.b32.xlu0 %v1330, 102
        %v1397 = vpop.permute.xlu0 %1396
        %1398 = vrot.lane.b32.xlu0 %v1331, 102
        %v1399 = vpop.permute.xlu0 %1398
        %v1400 = vsel %vm625, %v1393, %v1395
        %v1401 = vsel %vm625, %v1395, %v1397
        %v1402 = vsel %vm625, %v1397, %v1399
        %1406 = vrot.lane.b32.xlu0 %v1328, 80
        %v1407 = vpop.permute.xlu0 %1406
        %1408 = vrot.lane.b32.xlu0 %v1329, 80
        %v1409 = vpop.permute.xlu0 %1408
        %1410 = vrot.lane.b32.xlu0 %v1330, 80
        %v1411 = vpop.permute.xlu0 %1410
        %1412 = vrot.lane.b32.xlu0 %v1331, 80
        %v1413 = vpop.permute.xlu0 %1412
        %v1414 = vsel %vm640, %v1407, %v1409
        %v1415 = vsel %vm640, %v1409, %v1411
        %v1416 = vsel %vm640, %v1411, %v1413
        %1420 = vrot.lane.b32.xlu0 %v1328, 79
        %v1421 = vpop.permute.xlu0 %1420
        %1422 = vrot.lane.b32.xlu0 %v1329, 79
        %v1423 = vpop.permute.xlu0 %1422
        %1424 = vrot.lane.b32.xlu0 %v1330, 79
        %v1425 = vpop.permute.xlu0 %1424
        %1426 = vrot.lane.b32.xlu0 %v1331, 79
        %v1427 = vpop.permute.xlu0 %1426
        %v1428 = vsel %vm655, %v1421, %v1423
        %v1429 = vsel %vm655, %v1423, %v1425
        %v1430 = vsel %vm655, %v1425, %v1427
        %1434 = vrot.lane.b32.xlu0 %v1328, 78
        %v1435 = vpop.permute.xlu0 %1434
        %1436 = vrot.lane.b32.xlu0 %v1329, 78
        %v1437 = vpop.permute.xlu0 %1436
        %1438 = vrot.lane.b32.xlu0 %v1330, 78
        %v1439 = vpop.permute.xlu0 %1438
        %1440 = vrot.lane.b32.xlu0 %v1331, 78
        %v1441 = vpop.permute.xlu0 %1440
        %v1442 = vsel %vm670, %v1435, %v1437
        %v1443 = vsel %vm670, %v1437, %v1439
        %v1444 = vsel %vm670, %v1439, %v1441
        %1448 = vmatprep.subr.mxu0 %v1329
        %1449 = vmatpush1.msra.mxu0 %v1328
        %1450 = vmatprep.subr.mxu0 %v1345
        %1451 = vmatpush1.msra.mxu0 %v1344
        %1452 = vmatprep.subr.mxu0 %v1359
        %1453 = vmatpush1.msra.mxu0 %v1358
        %1454 = vmatprep.subr.mxu0 %v1373
        %1455 = vmatpush1.msra.mxu0 %v1372
        %1456 = vmatprep.subr.mxu0 %v1387
        %1457 = vmatpush1.msra.mxu0 %v1386
        %1458 = vmatprep.subr.mxu0 %v1401
        %1459 = vmatpush1.msra.mxu0 %v1400
        %1460 = vmatprep.subr.mxu0 %v1415
        %1461 = vmatpush1.msra.mxu0 %v1414
        %1462 = vmatprep.subr.mxu0 %v1429
        %1463 = vmatpush1.msra.mxu0 %v1428
        %1464 = vmatprep.subr.mxu0 %v1443
        %1465 = vmatpush1.msra.mxu0 %v1442
        %1466 = vmatprep.subr.mxu0 0.0
        %1467 = vmatpush1.msra.mxu0 0.0
        %1468 = vmatprep.subr.mxu0 0.0
        %1469 = vmatpush1.msra.mxu0 0.0
        %1470 = vmatprep.subr.mxu0 0.0
        %1471 = vmatpush1.msra.mxu0 0.0
        %1472 = vmatprep.subr.mxu0 0.0
        %1473 = vmatpush1.msra.mxu0 0.0
        %1474 = vmatprep.subr.mxu0 0.0
        %1475 = vmatpush1.msra.mxu0 0.0
        %1476 = vmatprep.subr.mxu0 0.0
        %1477 = vmatpush1.msra.mxu0 0.0
        %1478 = vmatprep.subr.mxu0 0.0
        %1479 = vmatpush1.msra.mxu0 0.0
        %1480 = vmatprep.subr.mxu0 0.0
        %1481 = vmatpush1.msra.mxu0 0.0
        %1482 = vmatprep.subr.mxu0 0.0
        %1483 = vmatpush1.msra.mxu0 0.0
        %1484 = vmatprep.subr.mxu0 0.0
        %1485 = vmatpush1.msra.mxu0 0.0
        %1486 = vmatprep.subr.mxu0 0.0
        %1487 = vmatpush1.msra.mxu0 0.0
        %1488 = vmatprep.subr.mxu0 0.0
        %1489 = vmatpush1.msra.mxu0 0.0
        %1490 = vmatprep.subr.mxu0 0.0
        %1491 = vmatpush1.msra.mxu0 0.0
        %1492 = vmatprep.subr.mxu0 0.0
        %1493 = vmatpush1.msra.mxu0 0.0
        %1494 = vmatprep.subr.mxu0 0.0
        %1495 = vmatpush1.msra.mxu0 0.0
        %1496 = vmatprep.subr.mxu0 0.0
        %1497 = vmatpush1.msra.mxu0 0.0
        %1498 = vmatprep.subr.mxu0 0.0
        %1499 = vmatpush1.msra.mxu0 0.0
        %1500 = vmatprep.subr.mxu0 0.0
        %1501 = vmatpush1.msra.mxu0 0.0
        %1502 = vmatprep.subr.mxu0 0.0
        %1503 = vmatpush1.msra.mxu0 0.0
        %1504 = vmatprep.subr.mxu0 0.0
        %1505 = vmatpush1.msra.mxu0 0.0
        %1506 = vmatprep.subr.mxu0 0.0
        %1507 = vmatpush1.msra.mxu0 0.0
        %1508 = vmatprep.subr.mxu0 0.0
        %1509 = vmatpush1.msra.mxu0 0.0
        %1510 = vmatprep.subr.mxu0 0.0
        %1511 = vmatpush1.msra.mxu0 0.0
        %1512 = vmatprep.mubr.f32.mxu0 0.0
        %1513 = vmatmul.mubr.f32.gmra.mrb[0].mxu0 %v689
        %v1514 = vpop.f32.mrb[0].mxu0
        %v1515 = vadd.f32 %v680, %v1514
        %v1516 = vpop.f32.mrb[0].mxu0
        %v1517 = vadd.f32 %v680, %v1516
        %1518 = vmatprep.mubr.f32.mxu0 0.0
        %1519 = vmatmul.mubr.f32.gmra.mrb[0].mxu0 %v692
        %v1520 = vpop.f32.mrb[0].mxu0
        %v1521 = vadd.f32 %v685, %v1520
        %v1522 = vpop.f32.mrb[0].mxu0
        %v1523 = vadd.f32 %v685, %v1522
        %1524 = vdwg.mxu0
        %1525 = vmatprep.subr.mxu0 0.0
        %1526 = vmatpush1.msra.mxu0 %v1330
        %1527 = vmatprep.subr.mxu0 0.0
        %1528 = vmatpush1.msra.mxu0 %v1346
        %1529 = vmatprep.subr.mxu0 0.0
        %1530 = vmatpush1.msra.mxu0 %v1360
        %1531 = vmatprep.subr.mxu0 0.0
        %1532 = vmatpush1.msra.mxu0 %v1374
        %1533 = vmatprep.subr.mxu0 0.0
        %1534 = vmatpush1.msra.mxu0 %v1388
        %1535 = vmatprep.subr.mxu0 0.0
        %1536 = vmatpush1.msra.mxu0 %v1402
        %1537 = vmatprep.subr.mxu0 0.0
        %1538 = vmatpush1.msra.mxu0 %v1416
        %1539 = vmatprep.subr.mxu0 0.0
        %1540 = vmatpush1.msra.mxu0 %v1430
        %1541 = vmatprep.subr.mxu0 0.0
        %1542 = vmatpush1.msra.mxu0 %v1444
        %1543 = vmatprep.subr.mxu0 0.0
        %1544 = vmatpush1.msra.mxu0 0.0
        %1545 = vmatprep.subr.mxu0 0.0
        %1546 = vmatpush1.msra.mxu0 0.0
        %1547 = vmatprep.subr.mxu0 0.0
        %1548 = vmatpush1.msra.mxu0 0.0
        %1549 = vmatprep.subr.mxu0 0.0
        %1550 = vmatpush1.msra.mxu0 0.0
        %1551 = vmatprep.subr.mxu0 0.0
        %1552 = vmatpush1.msra.mxu0 0.0
        %1553 = vmatprep.subr.mxu0 0.0
        %1554 = vmatpush1.msra.mxu0 0.0
        %1555 = vmatprep.subr.mxu0 0.0
        %1556 = vmatpush1.msra.mxu0 0.0
        %1557 = vmatprep.subr.mxu0 0.0
        %1558 = vmatpush1.msra.mxu0 0.0
        %1559 = vmatprep.subr.mxu0 0.0
        %1560 = vmatpush1.msra.mxu0 0.0
        %1561 = vmatprep.subr.mxu0 0.0
        %1562 = vmatpush1.msra.mxu0 0.0
        %1563 = vmatprep.subr.mxu0 0.0
        %1564 = vmatpush1.msra.mxu0 0.0
        %1565 = vmatprep.subr.mxu0 0.0
        %1566 = vmatpush1.msra.mxu0 0.0
        %1567 = vmatprep.subr.mxu0 0.0
        %1568 = vmatpush1.msra.mxu0 0.0
        %1569 = vmatprep.subr.mxu0 0.0
        %1570 = vmatpush1.msra.mxu0 0.0
        %1571 = vmatprep.subr.mxu0 0.0
        %1572 = vmatpush1.msra.mxu0 0.0
        %1573 = vmatprep.subr.mxu0 0.0
        %1574 = vmatpush1.msra.mxu0 0.0
        %1575 = vmatprep.subr.mxu0 0.0
        %1576 = vmatpush1.msra.mxu0 0.0
        %1577 = vmatprep.subr.mxu0 0.0
        %1578 = vmatpush1.msra.mxu0 0.0
        %1579 = vmatprep.subr.mxu0 0.0
        %1580 = vmatpush1.msra.mxu0 0.0
        %1581 = vmatprep.subr.mxu0 0.0
        %1582 = vmatpush1.msra.mxu0 0.0
        %1583 = vmatprep.subr.mxu0 0.0
        %1584 = vmatpush1.msra.mxu0 0.0
        %1585 = vmatprep.subr.mxu0 0.0
        %1586 = vmatpush1.msra.mxu0 0.0
        %1587 = vmatprep.subr.mxu0 0.0
        %1588 = vmatpush1.msra.mxu0 0.0
        %1589 = vmatprep.mubr.f32.mxu0 0.0
        %1590 = vmatmul.mubr.f32.gmra.mrb[0].mxu0 %v689
        %v1591 = vpop.f32.mrb[0].mxu0
        %v1592 = vadd.f32 %v680, %v1591
        %v1593 = vpop.f32.mrb[0].mxu0
        %1594 = vmatprep.mubr.f32.mxu0 0.0
        %1595 = vmatmul.mubr.f32.gmra.mrb[0].mxu0 %v692
        %v1596 = vpop.f32.mrb[0].mxu0
        %v1597 = vadd.f32 %v685, %v1596
        %v1598 = vpop.f32.mrb[0].mxu0
        %1599 = vdwg.mxu0
        %v1600 = vmax.f32 %v1515, 0.0
        %v1601 = vmax.f32 %v1517, 0.0
        %v1602 = vmax.f32 %v1592, 0.0
        %v1603 = vmax.f32 %v1521, 0.0
        %v1604 = vmax.f32 %v1523, 0.0
        %v1605 = vmax.f32 %v1597, 0.0
        %v1608 = vsel %vm870, %v1152, -1e+30
        %v1609 = vsel %vm871, %v1156, -1e+30
        %v1610 = vsel %vm872, %v1153, -1e+30
        %v1611 = vsel %vm873, %v1157, -1e+30
        %1616 = vrot.lane.b32.xlu0 %v1608, 127
        %v1617 = vpop.permute.xlu0 %1616
        %1618 = vrot.lane.b32.xlu0 %v1609, 127
        %v1619 = vpop.permute.xlu0 %1618
        %1620 = vrot.lane.b32.xlu0 %v1610, 127
        %v1621 = vpop.permute.xlu0 %1620
        %1622 = vrot.lane.b32.xlu0 %v1611, 127
        %v1623 = vpop.permute.xlu0 %1622
        %v1624 = vsel %vm565, %v1617, %v1619
        %v1625 = vsel %vm565, %v1619, %v1621
        %v1626 = vsel %vm565, %v1621, %v1623
        %v1631 = vmax.f32 %v1608, %v1624
        %v1632 = vmax.f32 %v1609, %v1625
        %v1633 = vmax.f32 %v1610, %v1626
        %v1634 = vmax.f32 %v1611, %v1623
        %1635 = vrot.lane.b32.xlu0 %v1608, 126
        %v1636 = vpop.permute.xlu0 %1635
        %1637 = vrot.lane.b32.xlu0 %v1609, 126
        %v1638 = vpop.permute.xlu0 %1637
        %1639 = vrot.lane.b32.xlu0 %v1610, 126
        %v1640 = vpop.permute.xlu0 %1639
        %1641 = vrot.lane.b32.xlu0 %v1611, 126
        %v1642 = vpop.permute.xlu0 %1641
        %v1643 = vsel %vm580, %v1636, %v1638
        %v1644 = vsel %vm580, %v1638, %v1640
        %v1645 = vsel %vm580, %v1640, %v1642
        %v1650 = vmax.f32 %v1631, %v1643
        %v1651 = vmax.f32 %v1632, %v1644
        %v1652 = vmax.f32 %v1633, %v1645
        %v1653 = vmax.f32 %v1634, %v1642
        %1658 = vrot.lane.b32.xlu0 %v1650, 104
        %v1659 = vpop.permute.xlu0 %1658
        %1660 = vrot.lane.b32.xlu0 %v1651, 104
        %v1661 = vpop.permute.xlu0 %1660
        %1662 = vrot.lane.b32.xlu0 %v1652, 104
        %v1663 = vpop.permute.xlu0 %1662
        %1664 = vrot.lane.b32.xlu0 %v1653, 104
        %v1665 = vpop.permute.xlu0 %1664
        %v1666 = vsel %vm595, %v1659, %v1661
        %v1667 = vsel %vm595, %v1661, %v1663
        %v1668 = vsel %vm595, %v1663, %v1665
        %v1672 = vmax.f32 %v1650, %v1666
        %v1673 = vmax.f32 %v1651, %v1667
        %v1674 = vmax.f32 %v1652, %v1668
        %1675 = vrot.lane.b32.xlu0 %v1650, 80
        %v1676 = vpop.permute.xlu0 %1675
        %1677 = vrot.lane.b32.xlu0 %v1651, 80
        %v1678 = vpop.permute.xlu0 %1677
        %1679 = vrot.lane.b32.xlu0 %v1652, 80
        %v1680 = vpop.permute.xlu0 %1679
        %1681 = vrot.lane.b32.xlu0 %v1653, 80
        %v1682 = vpop.permute.xlu0 %1681
        %v1683 = vsel %vm640, %v1676, %v1678
        %v1684 = vsel %vm640, %v1678, %v1680
        %v1685 = vsel %vm640, %v1680, %v1682
        %v1689 = vmax.f32 %v1672, %v1683
        %v1690 = vmax.f32 %v1673, %v1684
        %v1691 = vmax.f32 %v1674, %v1685
        %v1693 = vsel %vm357, %v1689, 0
        %v1696 = vsel %vm357, %v1690, 0
        %v1699 = vsel %vm357, %v1691, 0
        %1701 = vmatprep.subr.mxu0 %v1696
        %1702 = vmatpush1.msra.mxu0 %v1693
        %1703 = vmatprep.subr.mxu0 0.0
        %1704 = vmatpush1.msra.mxu0 0.0
        %1705 = vmatprep.subr.mxu0 0.0
        %1706 = vmatpush1.msra.mxu0 0.0
        %1707 = vmatprep.subr.mxu0 0.0
        %1708 = vmatpush1.msra.mxu0 0.0
        %1709 = vmatprep.subr.mxu0 0.0
        %1710 = vmatpush1.msra.mxu0 0.0
        %1711 = vmatprep.subr.mxu0 0.0
        %1712 = vmatpush1.msra.mxu0 0.0
        %1713 = vmatprep.subr.mxu0 0.0
        %1714 = vmatpush1.msra.mxu0 0.0
        %1715 = vmatprep.subr.mxu0 0.0
        %1716 = vmatpush1.msra.mxu0 0.0
        %1717 = vmatprep.subr.mxu0 0.0
        %1718 = vmatpush1.msra.mxu0 0.0
        %1719 = vmatprep.subr.mxu0 0.0
        %1720 = vmatpush1.msra.mxu0 0.0
        %1721 = vmatprep.subr.mxu0 0.0
        %1722 = vmatpush1.msra.mxu0 0.0
        %1723 = vmatprep.subr.mxu0 0.0
        %1724 = vmatpush1.msra.mxu0 0.0
        %1725 = vmatprep.subr.mxu0 0.0
        %1726 = vmatpush1.msra.mxu0 0.0
        %1727 = vmatprep.subr.mxu0 0.0
        %1728 = vmatpush1.msra.mxu0 0.0
        %1729 = vmatprep.subr.mxu0 0.0
        %1730 = vmatpush1.msra.mxu0 0.0
        %1731 = vmatprep.subr.mxu0 0.0
        %1732 = vmatpush1.msra.mxu0 0.0
        %1733 = vmatprep.subr.mxu0 0.0
        %1734 = vmatpush1.msra.mxu0 0.0
        %1735 = vmatprep.subr.mxu0 0.0
        %1736 = vmatpush1.msra.mxu0 0.0
        %1737 = vmatprep.subr.mxu0 0.0
        %1738 = vmatpush1.msra.mxu0 0.0
        %1739 = vmatprep.subr.mxu0 0.0
        %1740 = vmatpush1.msra.mxu0 0.0
        %1741 = vmatprep.subr.mxu0 0.0
        %1742 = vmatpush1.msra.mxu0 0.0
        %1743 = vmatprep.subr.mxu0 0.0
        %1744 = vmatpush1.msra.mxu0 0.0
        %1745 = vmatprep.subr.mxu0 0.0
        %1746 = vmatpush1.msra.mxu0 0.0
        %1747 = vmatprep.subr.mxu0 0.0
        %1748 = vmatpush1.msra.mxu0 0.0
        %1749 = vmatprep.subr.mxu0 0.0
        %1750 = vmatpush1.msra.mxu0 0.0
        %1751 = vmatprep.subr.mxu0 0.0
        %1752 = vmatpush1.msra.mxu0 0.0
        %1753 = vmatprep.subr.mxu0 0.0
        %1754 = vmatpush1.msra.mxu0 0.0
        %1755 = vmatprep.subr.mxu0 0.0
        %1756 = vmatpush1.msra.mxu0 0.0
        %1757 = vmatprep.subr.mxu0 0.0
        %1758 = vmatpush1.msra.mxu0 0.0
        %1759 = vmatprep.subr.mxu0 0.0
        %1760 = vmatpush1.msra.mxu0 0.0
        %1761 = vmatprep.subr.mxu0 0.0
        %1762 = vmatpush1.msra.mxu0 0.0
        %1763 = vmatprep.subr.mxu0 0.0
        %1764 = vmatpush1.msra.mxu0 0.0
        %1765 = vmatprep.mubr.f32.mxu0 0.0
        %1766 = vmatmul.mubr.f32.gmra.mrb[0].mxu0 %v966
        %v1767 = vpop.f32.mrb[0].mxu0
        %v1768 = vadd.f32 %v963, %v1767
        %v1769 = vpop.f32.mrb[0].mxu0
        %v1770 = vadd.f32 %v963, %v1769
        %1771 = vdwg.mxu0
        %1772 = vmatprep.subr.mxu0 0.0
        %1773 = vmatpush1.msra.mxu0 %v1699
        %1774 = vmatprep.subr.mxu0 0.0
        %1775 = vmatpush1.msra.mxu0 0.0
        %1776 = vmatprep.subr.mxu0 0.0
        %1777 = vmatpush1.msra.mxu0 0.0
        %1778 = vmatprep.subr.mxu0 0.0
        %1779 = vmatpush1.msra.mxu0 0.0
        %1780 = vmatprep.subr.mxu0 0.0
        %1781 = vmatpush1.msra.mxu0 0.0
        %1782 = vmatprep.subr.mxu0 0.0
        %1783 = vmatpush1.msra.mxu0 0.0
        %1784 = vmatprep.subr.mxu0 0.0
        %1785 = vmatpush1.msra.mxu0 0.0
        %1786 = vmatprep.subr.mxu0 0.0
        %1787 = vmatpush1.msra.mxu0 0.0
        %1788 = vmatprep.subr.mxu0 0.0
        %1789 = vmatpush1.msra.mxu0 0.0
        %1790 = vmatprep.subr.mxu0 0.0
        %1791 = vmatpush1.msra.mxu0 0.0
        %1792 = vmatprep.subr.mxu0 0.0
        %1793 = vmatpush1.msra.mxu0 0.0
        %1794 = vmatprep.subr.mxu0 0.0
        %1795 = vmatpush1.msra.mxu0 0.0
        %1796 = vmatprep.subr.mxu0 0.0
        %1797 = vmatpush1.msra.mxu0 0.0
        %1798 = vmatprep.subr.mxu0 0.0
        %1799 = vmatpush1.msra.mxu0 0.0
        %1800 = vmatprep.subr.mxu0 0.0
        %1801 = vmatpush1.msra.mxu0 0.0
        %1802 = vmatprep.subr.mxu0 0.0
        %1803 = vmatpush1.msra.mxu0 0.0
        %1804 = vmatprep.subr.mxu0 0.0
        %1805 = vmatpush1.msra.mxu0 0.0
        %1806 = vmatprep.subr.mxu0 0.0
        %1807 = vmatpush1.msra.mxu0 0.0
        %1808 = vmatprep.subr.mxu0 0.0
        %1809 = vmatpush1.msra.mxu0 0.0
        %1810 = vmatprep.subr.mxu0 0.0
        %1811 = vmatpush1.msra.mxu0 0.0
        %1812 = vmatprep.subr.mxu0 0.0
        %1813 = vmatpush1.msra.mxu0 0.0
        %1814 = vmatprep.subr.mxu0 0.0
        %1815 = vmatpush1.msra.mxu0 0.0
        %1816 = vmatprep.subr.mxu0 0.0
        %1817 = vmatpush1.msra.mxu0 0.0
        %1818 = vmatprep.subr.mxu0 0.0
        %1819 = vmatpush1.msra.mxu0 0.0
        %1820 = vmatprep.subr.mxu0 0.0
        %1821 = vmatpush1.msra.mxu0 0.0
        %1822 = vmatprep.subr.mxu0 0.0
        %1823 = vmatpush1.msra.mxu0 0.0
        %1824 = vmatprep.subr.mxu0 0.0
        %1825 = vmatpush1.msra.mxu0 0.0
        %1826 = vmatprep.subr.mxu0 0.0
        %1827 = vmatpush1.msra.mxu0 0.0
        %1828 = vmatprep.subr.mxu0 0.0
        %1829 = vmatpush1.msra.mxu0 0.0
        %1830 = vmatprep.subr.mxu0 0.0
        %1831 = vmatpush1.msra.mxu0 0.0
        %1832 = vmatprep.subr.mxu0 0.0
        %1833 = vmatpush1.msra.mxu0 0.0
        %1834 = vmatprep.subr.mxu0 0.0
        %1835 = vmatpush1.msra.mxu0 0.0
        %1836 = vmatprep.mubr.f32.mxu0 0.0
        %1837 = vmatmul.mubr.f32.gmra.mrb[0].mxu0 %v966
        %v1838 = vpop.f32.mrb[0].mxu0
        %v1839 = vadd.f32 %v963, %v1838
        %v1840 = vpop.f32.mrb[0].mxu0
        %1841 = vdwg.mxu0
        %v1842 = vmax.f32 %v1768, 0.0
        %v1843 = vmax.f32 %v1770, 0.0
        %v1844 = vmax.f32 %v1839, 0.0
        %1849 = vrot.lane.b32.xlu0 %v1320, 103
        %v1850 = vpop.permute.xlu0 %1849
        %1851 = vrot.lane.b32.xlu0 %v1321, 103
        %v1852 = vpop.permute.xlu0 %1851
        %1853 = vrot.lane.b32.xlu0 %v1322, 103
        %v1854 = vpop.permute.xlu0 %1853
        %1855 = vrot.lane.b32.xlu0 %v1323, 103
        %v1856 = vpop.permute.xlu0 %1855
        %v1857 = vsel %vm610, %v1850, %v1852
        %v1858 = vsel %vm610, %v1852, %v1854
        %v1859 = vsel %vm610, %v1854, %v1856
        %s1863 = scalar_lea.vmem %s314, 96 [#allocation5]
        %1864 = vst [vmem:[%s1863] sm:$0xff] %v1857
        %1865 = vst [vmem:[%s1863 + $0x8] sm:$0xff] %v1858
        %1866 = vst [vmem:[%s1863 + $0x10] sm:$0xff] %v1859
        %1867 = vst [vmem:[%s1863 + $0x18] sm:$0xff] %v1600
        %1868 = vst [vmem:[%s1863 + $0x20] sm:$0xff] %v1601
        %1869 = vst [vmem:[%s1863 + $0x28] sm:$0xff] %v1602
        %1870 = vst [vmem:[%s1863 + $0x30] sm:$0xff] %v1603
        %1871 = vst [vmem:[%s1863 + $0x38] sm:$0xff] %v1604
        %1872 = vst [vmem:[%s1863 + $0x40] sm:$0xff] %v1605
        %1873 = vst [vmem:[%s1863 + $0x48] sm:$0xff] %v1842
        %1874 = vst [vmem:[%s1863 + $0x50] sm:$0xff] %v1843
        %1875 = vst [vmem:[%s1863 + $0x58] sm:$0xff] %v1844
        %s1876 = sand.u32 %s204, 1
        %s1877 = scalar_lea.sflag [#allocation4], %s1876
        %s1878 = sand.u32 %s204, 1
        %s1879 = smul.addr %s1878, 192
        %s1880 = scalar_lea.vmem [#allocation5], %s1879
        // Predicated region
        $region57: #{tpu_custom_call.1} parent=51 // pred_check
          %p1881 = pneg %p214
        $region58: #{tpu_custom_call.1} parent=51 // pred_check_branch
          %1883 = sbr.rel (%p1881) target = $region60
        $region59: #{tpu_custom_call.1} parent=51 // pred_region
          %s1884 = smul.u32 2, %s23
          %s1886 = ssub.s32 3072, 3072
          %1887 = vsyncadd %s1877, %s1886
          %s1888 = smul.addr %s1884, 12
          %s1889 = smul.addr %s1888, 128
          %s1890 = scalar_lea.hbm %s8, %s1889
          %s1891 = sshll.u32 %s1880, 4
          %s1892 = int_to_ptr.vmem [resolvable:$true] %s1891
          %1897 = dma.vmem_to_hbm [thread:$0]  %s1892, 3072, %s1890, %s1877, 384, 384, 24
        $region60: #{tpu_custom_call.1} parent=51 // pred_fallthru
          _
      $region52: #{tpu_custom_call.1} parent=5 // pred_fallthru
        _
      %p1898 = scmp.le.s32.totalorder 2, %s18
      // Predicated region
      $region61: #{tpu_custom_call.1} parent=5 // pred_check
        %p1899 = pneg %p1898
      $region62: #{tpu_custom_call.1} parent=5 // pred_check_branch
        %1901 = sbr.rel (%p1899) target = $region64
      $region63: #{tpu_custom_call.1} parent=5 // pred_region
        %s1902 = ssub.s32 %s18, 2
        // Predicated region
        $region65: #{tpu_custom_call.1} parent=63 // pred_check
          %p1903 = pneg %p220
        $region66: #{tpu_custom_call.1} parent=63 // pred_check_branch
          %1905 = sbr.rel (%p1903) target = $region68
        $region67: #{tpu_custom_call.1} parent=63 // pred_region
          %s1906 = sand.u32 %s205, 1
          %s1907 = scalar_lea.sflag [#allocation4], %s1906
          %s1908 = sand.u32 %s205, 1
          %s1909 = smul.addr %s1908, 192
          %s1910 = scalar_lea.vmem [#allocation5], %s1909
          %1911 = dma.done %s1907, 3072
        $region68: #{tpu_custom_call.1} parent=63 // pred_fallthru
          _
      $region64: #{tpu_custom_call.1} parent=5 // pred_fallthru
        _
    $region6: #{tpu_custom_call.1} parent=1 // loop_footer
      %s22 = sadd.s32 1, %s18
    $region7: #{tpu_custom_call.1} parent=1 // loop_footer_branch
      %17 = sbr.rel target = $region3
    $region8: #{tpu_custom_call.1} parent=1 // loop_exit
      _
    %1912 = vsyncpa [#allocation3], 1
    %s1913 = scalar_lea.sflag [#allocation3], 1
    %1914 = vsyncpa %s1913, 1
    %1915 = vsyncpa [#allocation4], 1
    %s1916 = scalar_lea.sflag [#allocation4], 1
    %1917 = vsyncpa %s1916, 1

</llo_original>
